<compile_context>
chip_gen: v5e
topology: v5e:2x2
jax: 0.10.0
libtpu: 0.0.40
codegen_flags: <defaults>
</compile_context>

<pallas_src>
import math
import functools

import jax
import jax.numpy as jnp
from jax.experimental import pallas as pl
from jax.experimental.pallas import tpu as pltpu


# ----------------------------- fused kernel -------------------------------- #

def fused_transformer_kernel(x_ref,
                             wqkv_ref, bqkv_ref, wo_ref, bo_ref,
                             g1_ref, be1_ref, w1_ref, b1_ref,
                             w2_ref, b2_ref, g2_ref, be2_ref,
                             dec_w_ref, dec_b_ref,
                             out_ref, x_sc, *, nhead, bb, seq):
    """Grid = (batch_tiles ["parallel"], nlayers ["arbitrary"])."""
    l = pl.program_id(1)
    nl = pl.num_programs(1)

    # Layer 0: load the (already pos-encoded) input tile into the resident
    # activation scratch.
    @pl.when(l == 0)
    def _init():
        xv = x_ref[...]                                  # (bb, S, E)
        x_sc[...] = xv.reshape(bb * seq, xv.shape[-1])
    # TODO(synk): dropout layers are skipped (inference-mode identity).

    x = x_sc[...]                                        # (bb*S, E), f32
    E = x.shape[-1]
    hd = E // nhead
    scale = 1.0 / math.sqrt(hd)

    # ---- multi-head self-attention ----------------------------------------
    # Fused QKV projection: bf16 operands on the MXU, f32 accumulation.
    x_bf = x.astype(jnp.bfloat16)
    qkv = jnp.dot(x_bf, wqkv_ref[0],
                  preferred_element_type=jnp.float32) + bqkv_ref[0]
    q = (qkv[:, :E] * scale).astype(jnp.bfloat16)        # fold 1/sqrt(hd) in q
    k = qkv[:, E:2 * E].astype(jnp.bfloat16)
    v = qkv[:, 2 * E:].astype(jnp.bfloat16)

    # Head split: O(nhead) static lane slices + one leading-dim concat
    # (head-major), then a single batched einsum over the merged
    # (head * batch) leading axis.
    def heads(t):                                        # -> (nhead*bb, S, hd)
        t3 = t.reshape(bb, seq, E)
        return jnp.concatenate(
            [t3[:, :, h * hd:(h + 1) * hd] for h in range(nhead)], axis=0)

    qh, kh, vh = heads(q), heads(k), heads(v)

    s = jnp.einsum('nqd,nkd->nqk', qh, kh,
                   preferred_element_type=jnp.float32)   # f32 scores
    # Causal additive mask generated in-kernel (iota + select); equivalent to
    # TransformerModel.generate_square_subsequent_mask (finite -1e9 is exact
    # after the row-max subtraction).
    row = jax.lax.broadcasted_iota(jnp.int32, (seq, seq), 0)
    col = jax.lax.broadcasted_iota(jnp.int32, (seq, seq), 1)
    s = s + jnp.where(col <= row, 0.0, -1e9)[None, :, :]
    s = s - jnp.max(s, axis=-1, keepdims=True)           # softmax stats in f32
    p = jnp.exp(s)
    p = p * pl.reciprocal(jnp.sum(p, axis=-1, keepdims=True), approx=True)
    o = jnp.einsum('nqk,nkd->nqd', p.astype(jnp.bfloat16), vh,
                   preferred_element_type=jnp.float32)   # (nhead*bb, S, hd)

    # Un-split heads: lane concat back to (bb*S, E) with head-major features.
    attn = jnp.concatenate(
        [o[h * bb:(h + 1) * bb] for h in range(nhead)], axis=-1)
    attn = attn.reshape(bb * seq, E)
    attn = jnp.dot(attn.astype(jnp.bfloat16), wo_ref[0],
                   preferred_element_type=jnp.float32) + bo_ref[0]

    def layer_norm(y, g, b):
        mu = jnp.mean(y, axis=-1, keepdims=True)
        yc = y - mu
        var = jnp.mean(yc * yc, axis=-1, keepdims=True)
        return yc * jax.lax.rsqrt(var + 1e-5) * g + b

    # Post-norm residual blocks (dropout == identity at inference).
    h1 = layer_norm(x + attn, g1_ref[0], be1_ref[0])

    ff = jnp.dot(h1.astype(jnp.bfloat16), w1_ref[0],
                 preferred_element_type=jnp.float32) + b1_ref[0]
    ff = jnp.maximum(ff, 0.0)                            # relu
    ff = jnp.dot(ff.astype(jnp.bfloat16), w2_ref[0],
                 preferred_element_type=jnp.float32) + b2_ref[0]

    h2 = layer_norm(h1 + ff, g2_ref[0], be2_ref[0])
    x_sc[...] = h2                                       # carry to next layer

    # Last layer: last-token select + Linear(E -> 1) decoder, in-kernel.
    @pl.when(l == nl - 1)
    def _finalize():
        last = h2.reshape(bb, seq, E)[:, seq - 1:seq, :].reshape(bb, E)
        res = jnp.dot(last, dec_w_ref[...],
                      preferred_element_type=jnp.float32) + dec_b_ref[...]
        out_ref[...] = res.reshape(1, bb, 1)


# ------------------------------ wrappers ----------------------------------- #

def make_positional_encoding(max_len, d_model):
    position = jnp.arange(max_len, dtype=jnp.float32)[:, None]
    div_term = jnp.exp(jnp.arange(0, d_model, 2, dtype=jnp.float32)
                       * (-math.log(10000.0) / d_model))
    pe = jnp.zeros((max_len, d_model), dtype=jnp.float32)
    pe = pe.at[:, 0::2].set(jnp.sin(position * div_term))
    pe = pe.at[:, 1::2].set(jnp.cos(position * div_term))
    return pe


def generate_square_subsequent_mask(sz):
    i = jnp.arange(sz)[:, None]
    j = jnp.arange(sz)[None, :]
    return jnp.where(j <= i, 0.0, float('-inf')).astype(jnp.float32)


def make_params(key, ninp, nhead, nhid, nlayers, max_len=5000):
    scale = 0.05
    ks = jax.random.split(key, 4 * nlayers + 1)

    def rnd(k, shape):   # MXU operands stored in bf16 (f32 accumulation in-kernel)
        return (jax.random.normal(k, shape, jnp.float32) * scale).astype(jnp.bfloat16)

    zeros = lambda s: jnp.zeros(s, jnp.float32)
    ones = lambda s: jnp.ones(s, jnp.float32)

    return dict(
        pe=make_positional_encoding(max_len, ninp),
        wqkv=jnp.stack([rnd(ks[4 * l + 0], (ninp, 3 * ninp)) for l in range(nlayers)]),
        bqkv=zeros((nlayers, 1, 3 * ninp)),
        wo=jnp.stack([rnd(ks[4 * l + 1], (ninp, ninp)) for l in range(nlayers)]),
        bo=zeros((nlayers, 1, ninp)),
        ln1_g=ones((nlayers, 1, ninp)), ln1_b=zeros((nlayers, 1, ninp)),
        w1=jnp.stack([rnd(ks[4 * l + 2], (ninp, nhid)) for l in range(nlayers)]),
        b1=zeros((nlayers, 1, nhid)),
        w2=jnp.stack([rnd(ks[4 * l + 3], (nhid, ninp)) for l in range(nlayers)]),
        b2=zeros((nlayers, 1, ninp)),
        ln2_g=ones((nlayers, 1, ninp)), ln2_b=zeros((nlayers, 1, ninp)),
        # decoder: matches TransformerModel.init_weights (uniform(-0.1,0.1), zero bias)
        dec_w=jax.random.uniform(ks[-1], (ninp, 1), jnp.float32,
                                 minval=-0.1, maxval=0.1),
        dec_b=zeros((1, 1)),
    )


def transformer_forward(src, src_mask, params, nhead, *, block_batch=1):
    # src: (S, B, E) PyTorch layout.
    # TODO(synk): src_mask is assumed to be the standard causal mask; the kernel
    # regenerates it with iota+select (saves an (S,S) VMEM/DMA stream).
    S, B, E = src.shape
    L = params["wqkv"].shape[0]
    bb = min(block_batch, B)
    assert B % bb == 0
    nb = B // bb

    # Positional-encoding add in plain XLA (frees two VMEM input streams).
    x = jnp.transpose(src, (1, 0, 2)) + params["pe"][:S][None, :, :]   # (B,S,E)

    def const_spec(shape):
        nd = len(shape)
        return pl.BlockSpec(shape, lambda bt, l, _nd=nd: (0,) * _nd)

    def layer_spec(full_shape):
        tail = tuple(full_shape[1:])
        return pl.BlockSpec((1,) + tail,
                            lambda bt, l, _nt=len(tail): (l,) + (0,) * _nt)

    kernel = functools.partial(fused_transformer_kernel,
                               nhead=nhead, bb=bb, seq=S)

    out = pl.pallas_call(
        kernel,
        out_shape=jax.ShapeDtypeStruct((nb, bb, 1), jnp.float32),
        grid=(nb, L),
        in_specs=[
            pl.BlockSpec((bb, S, E), lambda bt, l: (bt, 0, 0)),      # x (+pe)
            layer_spec(params["wqkv"].shape), layer_spec(params["bqkv"].shape),
            layer_spec(params["wo"].shape),   layer_spec(params["bo"].shape),
            layer_spec(params["ln1_g"].shape), layer_spec(params["ln1_b"].shape),
            layer_spec(params["w1"].shape),   layer_spec(params["b1"].shape),
            layer_spec(params["w2"].shape),   layer_spec(params["b2"].shape),
            layer_spec(params["ln2_g"].shape), layer_spec(params["ln2_b"].shape),
            const_spec(params["dec_w"].shape),                       # decoder W
            const_spec(params["dec_b"].shape),                       # decoder b
        ],
        out_specs=pl.BlockSpec((1, bb, 1), lambda bt, l: (bt, 0, 0)),
        scratch_shapes=[pltpu.VMEM((bb * S, E), jnp.float32)],       # resident act
        compiler_params=pltpu.CompilerParams(
            dimension_semantics=("parallel", "arbitrary"),
            vmem_limit_bytes=48 * 1024 * 1024),
    )(x,
      params["wqkv"], params["bqkv"], params["wo"], params["bo"],
      params["ln1_g"], params["ln1_b"], params["w1"], params["b1"],
      params["w2"], params["b2"], params["ln2_g"], params["ln2_b"],
      params["dec_w"], params["dec_b"])
    return out.reshape(B, 1)


# --------------------------- pure-JAX reference ----------------------------- #

def reference_forward(src, params, nhead):
    S, B, E = src.shape
    L = params["wqkv"].shape[0]
    hd = E // nhead
    x = jnp.transpose(src, (1, 0, 2)) + params["pe"][:S][None, :, :]
    i = jnp.arange(S)
    mask = jnp.where(i[None, :] <= i[:, None], 0.0, -jnp.inf)

    def ln(y, g, b):
        mu = y.mean(-1, keepdims=True)
        var = ((y - mu) ** 2).mean(-1, keepdims=True)
        return (y - mu) / jnp.sqrt(var + 1e-5) * g + b

    for l in range(L):
        qkv = x @ params["wqkv"][l].astype(jnp.float32) + params["bqkv"][l]
        q, k, v = qkv[..., :E], qkv[..., E:2 * E], qkv[..., 2 * E:]
        split = lambda t: t.reshape(B, S, nhead, hd).transpose(0, 2, 1, 3)
        qh, kh, vh = split(q), split(k), split(v)
        s = jnp.einsum('bhqd,bhkd->bhqk', qh, kh) / math.sqrt(hd) + mask
        p = jax.nn.softmax(s, axis=-1)
        o = jnp.einsum('bhqk,bhkd->bhqd', p, vh).transpose(0, 2, 1, 3).reshape(B, S, E)
        attn = o @ params["wo"][l].astype(jnp.float32) + params["bo"][l]
        h1 = ln(x + attn, params["ln1_g"][l], params["ln1_b"][l])
        ff = jnp.maximum(h1 @ params["w1"][l].astype(jnp.float32) + params["b1"][l], 0.0)
        ff = ff @ params["w2"][l].astype(jnp.float32) + params["b2"][l]
        x = ln(h1 + ff, params["ln2_g"][l], params["ln2_b"][l])
    return x[:, -1, :] @ params["dec_w"] + params["dec_b"]


if __name__ == "__main__":
    S, B = 8, 2
    ninp, nhead, nhid, nlayers = 32, 4, 64, 2

    key = jax.random.PRNGKey(0)
    src = jax.random.normal(jax.random.fold_in(key, 999), (S, B, ninp), jnp.float32)
    src_mask = generate_square_subsequent_mask(S)
    params = make_params(key, ninp, nhead, nhid, nlayers)

    out = transformer_forward(src, src_mask, params, nhead, block_batch=1)
    out = jax.block_until_ready(out)
    assert out.shape == (B, 1) and out.dtype == jnp.float32

    ref = reference_forward(src, params, nhead)
    err = float(jnp.max(jnp.abs(out - ref)))
    assert err < 5e-2, f"mismatch vs reference: max abs err {err}"
    print("KERNEL_OK")
</pallas_src>

<mosaic_0001>
module attributes {stable_mosaic.version = 11 : i64} {
  func.func @fused_transformer_kernel(%arg0: i32, %arg1: i32, %arg2: memref<1x8x32xf32, #tpu.memory_space<vmem>>, %arg3: memref<1x32x96xbf16, #tpu.memory_space<vmem>>, %arg4: memref<1x1x96xf32, #tpu.memory_space<vmem>>, %arg5: memref<1x32x32xbf16, #tpu.memory_space<vmem>>, %arg6: memref<1x1x32xf32, #tpu.memory_space<vmem>>, %arg7: memref<1x1x32xf32, #tpu.memory_space<vmem>>, %arg8: memref<1x1x32xf32, #tpu.memory_space<vmem>>, %arg9: memref<1x32x64xbf16, #tpu.memory_space<vmem>>, %arg10: memref<1x1x64xf32, #tpu.memory_space<vmem>>, %arg11: memref<1x64x32xbf16, #tpu.memory_space<vmem>>, %arg12: memref<1x1x32xf32, #tpu.memory_space<vmem>>, %arg13: memref<1x1x32xf32, #tpu.memory_space<vmem>>, %arg14: memref<1x1x32xf32, #tpu.memory_space<vmem>>, %arg15: memref<32x1xf32, #tpu.memory_space<vmem>>, %arg16: memref<1x1xf32, #tpu.memory_space<vmem>>, %arg17: memref<1x1x1xf32, #tpu.memory_space<vmem>>, %arg18: memref<8x32xf32, #tpu.memory_space<vmem>>) attributes {dimension_semantics = [#tpu.dimension_semantics<parallel>, #tpu.dimension_semantics<arbitrary>], iteration_bounds = array<i64: 2, 2>, scalar_prefetch = 0 : i64, scratch_operands = 1 : i64, tpu.core_type = #tpu.core_type<tc>, window_params = [{transform_indices = @transform_0, window_bounds = array<i64: 1, 8, 32>}, {transform_indices = @transform_1, window_bounds = array<i64: 1, 32, 96>}, {transform_indices = @transform_2, window_bounds = array<i64: 1, 1, 96>}, {transform_indices = @transform_3, window_bounds = array<i64: 1, 32, 32>}, {transform_indices = @transform_4, window_bounds = array<i64: 1, 1, 32>}, {transform_indices = @transform_5, window_bounds = array<i64: 1, 1, 32>}, {transform_indices = @transform_6, window_bounds = array<i64: 1, 1, 32>}, {transform_indices = @transform_7, window_bounds = array<i64: 1, 32, 64>}, {transform_indices = @transform_8, window_bounds = array<i64: 1, 1, 64>}, {transform_indices = @transform_9, window_bounds = array<i64: 1, 64, 32>}, {transform_indices = @transform_10, window_bounds = array<i64: 1, 1, 32>}, {transform_indices = @transform_11, window_bounds = array<i64: 1, 1, 32>}, {transform_indices = @transform_12, window_bounds = array<i64: 1, 1, 32>}, {pipeline_mode = #tpu.pipeline_mode<synchronous>, transform_indices = @transform_13, window_bounds = array<i64: 32, 1>}, {pipeline_mode = #tpu.pipeline_mode<synchronous>, transform_indices = @transform_14, window_bounds = array<i64: 1, 1>}, {transform_indices = @transform_15, window_bounds = array<i64: 1, 1, 1>}]} {
    %c0_i32 = arith.constant 0 : i32
    %0 = arith.cmpi eq, %arg1, %c0_i32 : i32
    %1 = arith.extui %0 : i1 to i32
    %c0_i32_0 = arith.constant 0 : i32
    %2 = arith.cmpi ne, %1, %c0_i32_0 : i32
    scf.if %2 {
      %c0_62 = arith.constant 0 : index
      %c0_63 = arith.constant 0 : index
      %c0_64 = arith.constant 0 : index
      %146 = vector.load %arg2[%c0_62, %c0_63, %c0_64] : memref<1x8x32xf32, #tpu.memory_space<vmem>>, vector<1x8x32xf32>
      %147 = vector.shape_cast %146 : vector<1x8x32xf32> to vector<8x32xf32>
      %c0_65 = arith.constant 0 : index
      %c0_66 = arith.constant 0 : index
      %148 = vector.load %arg18[%c0_65, %c0_66] : memref<8x32xf32, #tpu.memory_space<vmem>>, vector<8x32xf32>
      tpu.vector_store %arg18[%c0_65, %c0_66], %147 {strides = array<i32>} : memref<8x32xf32, #tpu.memory_space<vmem>>, vector<8x32xf32>,
    } else {
    }
    %c0 = arith.constant 0 : index
    %c0_1 = arith.constant 0 : index
    %3 = vector.load %arg18[%c0, %c0_1] : memref<8x32xf32, #tpu.memory_space<vmem>>, vector<8x32xf32>
    %4 = arith.truncf %3 : vector<8x32xf32> to vector<8x32xbf16>
    %c0_2 = arith.constant 0 : index
    %c0_3 = arith.constant 0 : index
    %c0_4 = arith.constant 0 : index
    %5 = vector.load %arg3[%c0_2, %c0_3, %c0_4] : memref<1x32x96xbf16, #tpu.memory_space<vmem>>, vector<1x32x96xbf16>
    %6 = vector.shape_cast %5 : vector<1x32x96xbf16> to vector<32x96xbf16>
    %cst = arith.constant dense<0.000000e+00> : vector<8x96xf32>
    %7 = tpu.matmul %4, %6, %cst {dimension_numbers = #tpu.dot_dimension_numbers<[1], [0], [0], [1], [0, 0, 1, 1], [], []>} : vector<8x32xbf16>, vector<32x96xbf16>, vector<8x96xf32> -> vector<8x96xf32>
    %c0_5 = arith.constant 0 : index
    %c0_6 = arith.constant 0 : index
    %c0_7 = arith.constant 0 : index
    %8 = vector.load %arg4[%c0_5, %c0_6, %c0_7] : memref<1x1x96xf32, #tpu.memory_space<vmem>>, vector<1x1x96xf32>
    %9 = vector.shape_cast %8 : vector<1x1x96xf32> to vector<1x96xf32>
    %10 = vector.broadcast %9 : vector<1x96xf32> to vector<8x96xf32>
    %11 = arith.addf %7, %10 : vector<8x96xf32>
    %12 = vector.extract_strided_slice %11 {offsets = [0, 0], sizes = [8, 32], strides = [1, 1]} : vector<8x96xf32> to vector<8x32xf32>
    %cst_8 = arith.constant 0.353553385 : f32
    %13 = vector.broadcast %cst_8 : f32 to vector<8x32xf32>
    %14 = arith.mulf %12, %13 : vector<8x32xf32>
    %15 = arith.truncf %14 : vector<8x32xf32> to vector<8x32xbf16>
    %16 = vector.extract_strided_slice %11 {offsets = [0, 32], sizes = [8, 32], strides = [1, 1]} : vector<8x96xf32> to vector<8x32xf32>
    %17 = arith.truncf %16 : vector<8x32xf32> to vector<8x32xbf16>
    %18 = vector.extract_strided_slice %11 {offsets = [0, 64], sizes = [8, 32], strides = [1, 1]} : vector<8x96xf32> to vector<8x32xf32>
    %19 = arith.truncf %18 : vector<8x32xf32> to vector<8x32xbf16>
    %20 = vector.shape_cast %15 : vector<8x32xbf16> to vector<1x8x32xbf16>
    %21 = vector.extract_strided_slice %20 {offsets = [0, 0, 0], sizes = [1, 8, 8], strides = [1, 1, 1]} : vector<1x8x32xbf16> to vector<1x8x8xbf16>
    %22 = vector.extract_strided_slice %20 {offsets = [0, 0, 8], sizes = [1, 8, 8], strides = [1, 1, 1]} : vector<1x8x32xbf16> to vector<1x8x8xbf16>
    %23 = vector.extract_strided_slice %20 {offsets = [0, 0, 16], sizes = [1, 8, 8], strides = [1, 1, 1]} : vector<1x8x32xbf16> to vector<1x8x8xbf16>
    %24 = vector.extract_strided_slice %20 {offsets = [0, 0, 24], sizes = [1, 8, 8], strides = [1, 1, 1]} : vector<1x8x32xbf16> to vector<1x8x8xbf16>
    %25 = tpu.concatenate %21, %22, %23, %24 in 0 : vector<1x8x8xbf16>, vector<1x8x8xbf16>, vector<1x8x8xbf16>, vector<1x8x8xbf16> -> vector<4x8x8xbf16>
    %26 = vector.shape_cast %17 : vector<8x32xbf16> to vector<1x8x32xbf16>
    %27 = vector.extract_strided_slice %26 {offsets = [0, 0, 0], sizes = [1, 8, 8], strides = [1, 1, 1]} : vector<1x8x32xbf16> to vector<1x8x8xbf16>
    %28 = vector.extract_strided_slice %26 {offsets = [0, 0, 8], sizes = [1, 8, 8], strides = [1, 1, 1]} : vector<1x8x32xbf16> to vector<1x8x8xbf16>
    %29 = vector.extract_strided_slice %26 {offsets = [0, 0, 16], sizes = [1, 8, 8], strides = [1, 1, 1]} : vector<1x8x32xbf16> to vector<1x8x8xbf16>
    %30 = vector.extract_strided_slice %26 {offsets = [0, 0, 24], sizes = [1, 8, 8], strides = [1, 1, 1]} : vector<1x8x32xbf16> to vector<1x8x8xbf16>
    %31 = tpu.concatenate %27, %28, %29, %30 in 0 : vector<1x8x8xbf16>, vector<1x8x8xbf16>, vector<1x8x8xbf16>, vector<1x8x8xbf16> -> vector<4x8x8xbf16>
    %32 = vector.shape_cast %19 : vector<8x32xbf16> to vector<1x8x32xbf16>
    %33 = vector.extract_strided_slice %32 {offsets = [0, 0, 0], sizes = [1, 8, 8], strides = [1, 1, 1]} : vector<1x8x32xbf16> to vector<1x8x8xbf16>
    %34 = vector.extract_strided_slice %32 {offsets = [0, 0, 8], sizes = [1, 8, 8], strides = [1, 1, 1]} : vector<1x8x32xbf16> to vector<1x8x8xbf16>
    %35 = vector.extract_strided_slice %32 {offsets = [0, 0, 16], sizes = [1, 8, 8], strides = [1, 1, 1]} : vector<1x8x32xbf16> to vector<1x8x8xbf16>
    %36 = vector.extract_strided_slice %32 {offsets = [0, 0, 24], sizes = [1, 8, 8], strides = [1, 1, 1]} : vector<1x8x32xbf16> to vector<1x8x8xbf16>
    %37 = tpu.concatenate %33, %34, %35, %36 in 0 : vector<1x8x8xbf16>, vector<1x8x8xbf16>, vector<1x8x8xbf16>, vector<1x8x8xbf16> -> vector<4x8x8xbf16>
    "tpu.trace_start"() <{level = 10 : i32, message = "nqd,nkd->nqk"}> : () -> ()
    %cst_9 = arith.constant dense<0.000000e+00> : vector<4x8x8xf32>
    %38 = tpu.matmul %25, %31, %cst_9 {dimension_numbers = #tpu.dot_dimension_numbers<[2], [2], [1], [1], [0, 0, 0, 1, 1, 1], [0], [0]>} : vector<4x8x8xbf16>, vector<4x8x8xbf16>, vector<4x8x8xf32> -> vector<4x8x8xf32>
    "tpu.trace_stop"() : () -> ()
    %39 = tpu.iota {dimensions = array<i32: 0>} : vector<8x8xi32>
    %40 = tpu.iota {dimensions = array<i32: 1>} : vector<8x8xi32>
    %41 = arith.cmpi sle, %40, %39 : vector<8x8xi32>
    %cst_10 = arith.constant 0.000000e+00 : f32
    %cst_11 = arith.constant -1.000000e+09 : f32
    %42 = vector.broadcast %cst_10 : f32 to vector<8x8xf32>
    %43 = vector.broadcast %cst_11 : f32 to vector<8x8xf32>
    %44 = arith.select %41, %42, %43 : vector<8x8xi1>, vector<8x8xf32>
    %45 = vector.shape_cast %44 : vector<8x8xf32> to vector<1x8x8xf32>
    %46 = vector.broadcast %45 : vector<1x8x8xf32> to vector<4x8x8xf32>
    %47 = arith.addf %38, %46 : vector<4x8x8xf32>
    %cst_12 = arith.constant dense<0xFF800000> : vector<4x8xf32>
    %48 = vector.multi_reduction <maximumf>, %47, %cst_12 [2] : vector<4x8x8xf32> to vector<4x8xf32>
    %49 = vector.shape_cast %48 : vector<4x8xf32> to vector<4x8x1xf32>
    %50 = vector.broadcast %49 : vector<4x8x1xf32> to vector<4x8x8xf32>
    %51 = arith.subf %47, %50 : vector<4x8x8xf32>
    %52 = math.exp %51 : vector<4x8x8xf32>
    %cst_13 = arith.constant dense<0.000000e+00> : vector<4x8xf32>
    %53 = vector.multi_reduction <add>, %52, %cst_13 [2] : vector<4x8x8xf32> to vector<4x8xf32>
    %54 = vector.shape_cast %53 : vector<4x8xf32> to vector<4x8x1xf32>
    %55 = tpu.reciprocal %54 {approx = true} : vector<4x8x1xf32> -> vector<4x8x1xf32>
    %56 = vector.broadcast %55 : vector<4x8x1xf32> to vector<4x8x8xf32>
    %57 = arith.mulf %52, %56 : vector<4x8x8xf32>
    %58 = arith.truncf %57 : vector<4x8x8xf32> to vector<4x8x8xbf16>
    "tpu.trace_start"() <{level = 10 : i32, message = "nqk,nkd->nqd"}> : () -> ()
    %cst_14 = arith.constant dense<0.000000e+00> : vector<4x8x8xf32>
    %59 = tpu.matmul %58, %37, %cst_14 {dimension_numbers = #tpu.dot_dimension_numbers<[2], [1], [1], [2], [0, 0, 0, 1, 1, 2], [0], [0]>} : vector<4x8x8xbf16>, vector<4x8x8xbf16>, vector<4x8x8xf32> -> vector<4x8x8xf32>
    "tpu.trace_stop"() : () -> ()
    %60 = vector.extract_strided_slice %59 {offsets = [0, 0, 0], sizes = [1, 8, 8], strides = [1, 1, 1]} : vector<4x8x8xf32> to vector<1x8x8xf32>
    %61 = vector.extract_strided_slice %59 {offsets = [1, 0, 0], sizes = [1, 8, 8], strides = [1, 1, 1]} : vector<4x8x8xf32> to vector<1x8x8xf32>
    %62 = vector.extract_strided_slice %59 {offsets = [2, 0, 0], sizes = [1, 8, 8], strides = [1, 1, 1]} : vector<4x8x8xf32> to vector<1x8x8xf32>
    %63 = vector.extract_strided_slice %59 {offsets = [3, 0, 0], sizes = [1, 8, 8], strides = [1, 1, 1]} : vector<4x8x8xf32> to vector<1x8x8xf32>
    %64 = tpu.concatenate %60, %61, %62, %63 in 2 : vector<1x8x8xf32>, vector<1x8x8xf32>, vector<1x8x8xf32>, vector<1x8x8xf32> -> vector<1x8x32xf32>
    %65 = vector.shape_cast %64 : vector<1x8x32xf32> to vector<8x32xf32>
    %66 = arith.truncf %65 : vector<8x32xf32> to vector<8x32xbf16>
    %c0_15 = arith.constant 0 : index
    %c0_16 = arith.constant 0 : index
    %c0_17 = arith.constant 0 : index
    %67 = vector.load %arg5[%c0_15, %c0_16, %c0_17] : memref<1x32x32xbf16, #tpu.memory_space<vmem>>, vector<1x32x32xbf16>
    %68 = vector.shape_cast %67 : vector<1x32x32xbf16> to vector<32x32xbf16>
    %cst_18 = arith.constant dense<0.000000e+00> : vector<8x32xf32>
    %69 = tpu.matmul %66, %68, %cst_18 {dimension_numbers = #tpu.dot_dimension_numbers<[1], [0], [0], [1], [0, 0, 1, 1], [], []>} : vector<8x32xbf16>, vector<32x32xbf16>, vector<8x32xf32> -> vector<8x32xf32>
    %c0_19 = arith.constant 0 : index
    %c0_20 = arith.constant 0 : index
    %c0_21 = arith.constant 0 : index
    %70 = vector.load %arg6[%c0_19, %c0_20, %c0_21] : memref<1x1x32xf32, #tpu.memory_space<vmem>>, vector<1x1x32xf32>
    %71 = vector.shape_cast %70 : vector<1x1x32xf32> to vector<1x32xf32>
    %72 = vector.broadcast %71 : vector<1x32xf32> to vector<8x32xf32>
    %73 = arith.addf %69, %72 : vector<8x32xf32>
    %74 = arith.addf %3, %73 : vector<8x32xf32>
    %c0_22 = arith.constant 0 : index
    %c0_23 = arith.constant 0 : index
    %c0_24 = arith.constant 0 : index
    %75 = vector.load %arg7[%c0_22, %c0_23, %c0_24] : memref<1x1x32xf32, #tpu.memory_space<vmem>>, vector<1x1x32xf32>
    %76 = vector.shape_cast %75 : vector<1x1x32xf32> to vector<1x32xf32>
    %c0_25 = arith.constant 0 : index
    %c0_26 = arith.constant 0 : index
    %c0_27 = arith.constant 0 : index
    %77 = vector.load %arg8[%c0_25, %c0_26, %c0_27] : memref<1x1x32xf32, #tpu.memory_space<vmem>>, vector<1x1x32xf32>
    %78 = vector.shape_cast %77 : vector<1x1x32xf32> to vector<1x32xf32>
    %cst_28 = arith.constant dense<0.000000e+00> : vector<8xf32>
    %79 = vector.multi_reduction <add>, %74, %cst_28 [1] : vector<8x32xf32> to vector<8xf32>
    %80 = vector.shape_cast %79 : vector<8xf32> to vector<8x1xf32>
    %cst_29 = arith.constant 3.200000e+01 : f32
    %81 = vector.broadcast %cst_29 : f32 to vector<8x1xf32>
    %82 = arith.divf %80, %81 : vector<8x1xf32>
    %83 = vector.broadcast %82 : vector<8x1xf32> to vector<8x32xf32>
    %84 = arith.subf %74, %83 : vector<8x32xf32>
    %85 = arith.mulf %84, %84 : vector<8x32xf32>
    %cst_30 = arith.constant dense<0.000000e+00> : vector<8xf32>
    %86 = vector.multi_reduction <add>, %85, %cst_30 [1] : vector<8x32xf32> to vector<8xf32>
    %87 = vector.shape_cast %86 : vector<8xf32> to vector<8x1xf32>
    %cst_31 = arith.constant 3.200000e+01 : f32
    %88 = vector.broadcast %cst_31 : f32 to vector<8x1xf32>
    %89 = arith.divf %87, %88 : vector<8x1xf32>
    %cst_32 = arith.constant 9.99999974E-6 : f32
    %90 = vector.broadcast %cst_32 : f32 to vector<8x1xf32>
    %91 = arith.addf %89, %90 : vector<8x1xf32>
    %92 = math.rsqrt %91 : vector<8x1xf32>
    %93 = vector.broadcast %92 : vector<8x1xf32> to vector<8x32xf32>
    %94 = arith.mulf %84, %93 : vector<8x32xf32>
    %95 = vector.broadcast %76 : vector<1x32xf32> to vector<8x32xf32>
    %96 = arith.mulf %94, %95 : vector<8x32xf32>
    %97 = vector.broadcast %78 : vector<1x32xf32> to vector<8x32xf32>
    %98 = arith.addf %96, %97 : vector<8x32xf32>
    %99 = arith.truncf %98 : vector<8x32xf32> to vector<8x32xbf16>
    %c0_33 = arith.constant 0 : index
    %c0_34 = arith.constant 0 : index
    %c0_35 = arith.constant 0 : index
    %100 = vector.load %arg9[%c0_33, %c0_34, %c0_35] : memref<1x32x64xbf16, #tpu.memory_space<vmem>>, vector<1x32x64xbf16>
    %101 = vector.shape_cast %100 : vector<1x32x64xbf16> to vector<32x64xbf16>
    %cst_36 = arith.constant dense<0.000000e+00> : vector<8x64xf32>
    %102 = tpu.matmul %99, %101, %cst_36 {dimension_numbers = #tpu.dot_dimension_numbers<[1], [0], [0], [1], [0, 0, 1, 1], [], []>} : vector<8x32xbf16>, vector<32x64xbf16>, vector<8x64xf32> -> vector<8x64xf32>
    %c0_37 = arith.constant 0 : index
    %c0_38 = arith.constant 0 : index
    %c0_39 = arith.constant 0 : index
    %103 = vector.load %arg10[%c0_37, %c0_38, %c0_39] : memref<1x1x64xf32, #tpu.memory_space<vmem>>, vector<1x1x64xf32>
    %104 = vector.shape_cast %103 : vector<1x1x64xf32> to vector<1x64xf32>
    %105 = vector.broadcast %104 : vector<1x64xf32> to vector<8x64xf32>
    %106 = arith.addf %102, %105 : vector<8x64xf32>
    %cst_40 = arith.constant 0.000000e+00 : f32
    %107 = vector.broadcast %cst_40 : f32 to vector<8x64xf32>
    %108 = arith.maximumf %106, %107 : vector<8x64xf32>
    %109 = arith.truncf %108 : vector<8x64xf32> to vector<8x64xbf16>
    %c0_41 = arith.constant 0 : index
    %c0_42 = arith.constant 0 : index
    %c0_43 = arith.constant 0 : index
    %110 = vector.load %arg11[%c0_41, %c0_42, %c0_43] : memref<1x64x32xbf16, #tpu.memory_space<vmem>>, vector<1x64x32xbf16>
    %111 = vector.shape_cast %110 : vector<1x64x32xbf16> to vector<64x32xbf16>
    %cst_44 = arith.constant dense<0.000000e+00> : vector<8x32xf32>
    %112 = tpu.matmul %109, %111, %cst_44 {dimension_numbers = #tpu.dot_dimension_numbers<[1], [0], [0], [1], [0, 0, 1, 1], [], []>} : vector<8x64xbf16>, vector<64x32xbf16>, vector<8x32xf32> -> vector<8x32xf32>
    %c0_45 = arith.constant 0 : index
    %c0_46 = arith.constant 0 : index
    %c0_47 = arith.constant 0 : index
    %113 = vector.load %arg12[%c0_45, %c0_46, %c0_47] : memref<1x1x32xf32, #tpu.memory_space<vmem>>, vector<1x1x32xf32>
    %114 = vector.shape_cast %113 : vector<1x1x32xf32> to vector<1x32xf32>
    %115 = vector.broadcast %114 : vector<1x32xf32> to vector<8x32xf32>
    %116 = arith.addf %112, %115 : vector<8x32xf32>
    %117 = arith.addf %98, %116 : vector<8x32xf32>
    %c0_48 = arith.constant 0 : index
    %c0_49 = arith.constant 0 : index
    %c0_50 = arith.constant 0 : index
    %118 = vector.load %arg13[%c0_48, %c0_49, %c0_50] : memref<1x1x32xf32, #tpu.memory_space<vmem>>, vector<1x1x32xf32>
    %119 = vector.shape_cast %118 : vector<1x1x32xf32> to vector<1x32xf32>
    %c0_51 = arith.constant 0 : index
    %c0_52 = arith.constant 0 : index
    %c0_53 = arith.constant 0 : index
    %120 = vector.load %arg14[%c0_51, %c0_52, %c0_53] : memref<1x1x32xf32, #tpu.memory_space<vmem>>, vector<1x1x32xf32>
    %121 = vector.shape_cast %120 : vector<1x1x32xf32> to vector<1x32xf32>
    %cst_54 = arith.constant dense<0.000000e+00> : vector<8xf32>
    %122 = vector.multi_reduction <add>, %117, %cst_54 [1] : vector<8x32xf32> to vector<8xf32>
    %123 = vector.shape_cast %122 : vector<8xf32> to vector<8x1xf32>
    %cst_55 = arith.constant 3.200000e+01 : f32
    %124 = vector.broadcast %cst_55 : f32 to vector<8x1xf32>
    %125 = arith.divf %123, %124 : vector<8x1xf32>
    %126 = vector.broadcast %125 : vector<8x1xf32> to vector<8x32xf32>
    %127 = arith.subf %117, %126 : vector<8x32xf32>
    %128 = arith.mulf %127, %127 : vector<8x32xf32>
    %cst_56 = arith.constant dense<0.000000e+00> : vector<8xf32>
    %129 = vector.multi_reduction <add>, %128, %cst_56 [1] : vector<8x32xf32> to vector<8xf32>
    %130 = vector.shape_cast %129 : vector<8xf32> to vector<8x1xf32>
    %cst_57 = arith.constant 3.200000e+01 : f32
    %131 = vector.broadcast %cst_57 : f32 to vector<8x1xf32>
    %132 = arith.divf %130, %131 : vector<8x1xf32>
    %cst_58 = arith.constant 9.99999974E-6 : f32
    %133 = vector.broadcast %cst_58 : f32 to vector<8x1xf32>
    %134 = arith.addf %132, %133 : vector<8x1xf32>
    %135 = math.rsqrt %134 : vector<8x1xf32>
    %136 = vector.broadcast %135 : vector<8x1xf32> to vector<8x32xf32>
    %137 = arith.mulf %127, %136 : vector<8x32xf32>
    %138 = vector.broadcast %119 : vector<1x32xf32> to vector<8x32xf32>
    %139 = arith.mulf %137, %138 : vector<8x32xf32>
    %140 = vector.broadcast %121 : vector<1x32xf32> to vector<8x32xf32>
    %141 = arith.addf %139, %140 : vector<8x32xf32>
    %c0_59 = arith.constant 0 : index
    %c0_60 = arith.constant 0 : index
    %142 = vector.load %arg18[%c0_59, %c0_60] : memref<8x32xf32, #tpu.memory_space<vmem>>, vector<8x32xf32>
    tpu.vector_store %arg18[%c0_59, %c0_60], %141 {strides = array<i32>} : memref<8x32xf32, #tpu.memory_space<vmem>>, vector<8x32xf32>,
    %c1_i32 = arith.constant 1 : i32
    %143 = arith.cmpi eq, %arg1, %c1_i32 : i32
    %144 = arith.extui %143 : i1 to i32
    %c0_i32_61 = arith.constant 0 : i32
    %145 = arith.cmpi ne, %144, %c0_i32_61 : i32
    scf.if %145 {
      %146 = vector.shape_cast %141 : vector<8x32xf32> to vector<1x8x32xf32>
      %147 = vector.extract_strided_slice %146 {offsets = [0, 7, 0], sizes = [1, 1, 32], strides = [1, 1, 1]} : vector<1x8x32xf32> to vector<1x1x32xf32>
      %148 = vector.shape_cast %147 : vector<1x1x32xf32> to vector<1x32xf32>
      %c0_62 = arith.constant 0 : index
      %c0_63 = arith.constant 0 : index
      %149 = vector.load %arg15[%c0_62, %c0_63] : memref<32x1xf32, #tpu.memory_space<vmem>>, vector<32x1xf32>
      %cst_64 = arith.constant dense<0.000000e+00> : vector<1x1xf32>
      %150 = tpu.matmul %148, %149, %cst_64 {dimension_numbers = #tpu.dot_dimension_numbers<[1], [0], [0], [1], [0, 0, 1, 1], [], []>} : vector<1x32xf32>, vector<32x1xf32>, vector<1x1xf32> -> vector<1x1xf32>
      %c0_65 = arith.constant 0 : index
      %c0_66 = arith.constant 0 : index
      %151 = vector.load %arg16[%c0_65, %c0_66] : memref<1x1xf32, #tpu.memory_space<vmem>>, vector<1x1xf32>
      %152 = arith.addf %150, %151 : vector<1x1xf32>
      %153 = vector.shape_cast %152 : vector<1x1xf32> to vector<1x1x1xf32>
      %c0_67 = arith.constant 0 : index
      %c0_68 = arith.constant 0 : index
      %c0_69 = arith.constant 0 : index
      %154 = vector.load %arg17[%c0_67, %c0_68, %c0_69] : memref<1x1x1xf32, #tpu.memory_space<vmem>>, vector<1x1x1xf32>
      tpu.vector_store %arg17[%c0_67, %c0_68, %c0_69], %153 {strides = array<i32>} : memref<1x1x1xf32, #tpu.memory_space<vmem>>, vector<1x1x1xf32>,
    } else {
    }
    return
  }
  func.func @transform_0(%arg0: i32, %arg1: i32) -> (i32, i32, i32) {
    %c0_i32 = arith.constant 0 : i32
    %c0_i32_0 = arith.constant 0 : i32
    %c0_i32_1 = arith.constant 0 : i32
    return %arg0, %c0_i32, %c0_i32_0 : i32, i32, i32
  }
  func.func @transform_1(%arg0: i32, %arg1: i32) -> (i32, i32, i32) {
    %c0_i32 = arith.constant 0 : i32
    %c0_i32_0 = arith.constant 0 : i32
    %c0_i32_1 = arith.constant 0 : i32
    return %arg1, %c0_i32, %c0_i32_0 : i32, i32, i32
  }
  func.func @transform_2(%arg0: i32, %arg1: i32) -> (i32, i32, i32) {
    %c0_i32 = arith.constant 0 : i32
    %c0_i32_0 = arith.constant 0 : i32
    %c0_i32_1 = arith.constant 0 : i32
    return %arg1, %c0_i32, %c0_i32_0 : i32, i32, i32
  }
  func.func @transform_3(%arg0: i32, %arg1: i32) -> (i32, i32, i32) {
    %c0_i32 = arith.constant 0 : i32
    %c0_i32_0 = arith.constant 0 : i32
    %c0_i32_1 = arith.constant 0 : i32
    return %arg1, %c0_i32, %c0_i32_0 : i32, i32, i32
  }
  func.func @transform_4(%arg0: i32, %arg1: i32) -> (i32, i32, i32) {
    %c0_i32 = arith.constant 0 : i32
    %c0_i32_0 = arith.constant 0 : i32
    %c0_i32_1 = arith.constant 0 : i32
    return %arg1, %c0_i32, %c0_i32_0 : i32, i32, i32
  }
  func.func @transform_5(%arg0: i32, %arg1: i32) -> (i32, i32, i32) {
    %c0_i32 = arith.constant 0 : i32
    %c0_i32_0 = arith.constant 0 : i32
    %c0_i32_1 = arith.constant 0 : i32
    return %arg1, %c0_i32, %c0_i32_0 : i32, i32, i32
  }
  func.func @transform_6(%arg0: i32, %arg1: i32) -> (i32, i32, i32) {
    %c0_i32 = arith.constant 0 : i32
    %c0_i32_0 = arith.constant 0 : i32
    %c0_i32_1 = arith.constant 0 : i32
    return %arg1, %c0_i32, %c0_i32_0 : i32, i32, i32
  }
  func.func @transform_7(%arg0: i32, %arg1: i32) -> (i32, i32, i32) {
    %c0_i32 = arith.constant 0 : i32
    %c0_i32_0 = arith.constant 0 : i32
    %c0_i32_1 = arith.constant 0 : i32
    return %arg1, %c0_i32, %c0_i32_0 : i32, i32, i32
  }
  func.func @transform_8(%arg0: i32, %arg1: i32) -> (i32, i32, i32) {
    %c0_i32 = arith.constant 0 : i32
    %c0_i32_0 = arith.constant 0 : i32
    %c0_i32_1 = arith.constant 0 : i32
    return %arg1, %c0_i32, %c0_i32_0 : i32, i32, i32
  }
  func.func @transform_9(%arg0: i32, %arg1: i32) -> (i32, i32, i32) {
    %c0_i32 = arith.constant 0 : i32
    %c0_i32_0 = arith.constant 0 : i32
    %c0_i32_1 = arith.constant 0 : i32
    return %arg1, %c0_i32, %c0_i32_0 : i32, i32, i32
  }
  func.func @transform_10(%arg0: i32, %arg1: i32) -> (i32, i32, i32) {
    %c0_i32 = arith.constant 0 : i32
    %c0_i32_0 = arith.constant 0 : i32
    %c0_i32_1 = arith.constant 0 : i32
    return %arg1, %c0_i32, %c0_i32_0 : i32, i32, i32
  }
  func.func @transform_11(%arg0: i32, %arg1: i32) -> (i32, i32, i32) {
    %c0_i32 = arith.constant 0 : i32
    %c0_i32_0 = arith.constant 0 : i32
    %c0_i32_1 = arith.constant 0 : i32
    return %arg1, %c0_i32, %c0_i32_0 : i32, i32, i32
  }
  func.func @transform_12(%arg0: i32, %arg1: i32) -> (i32, i32, i32) {
    %c0_i32 = arith.constant 0 : i32
    %c0_i32_0 = arith.constant 0 : i32
    %c0_i32_1 = arith.constant 0 : i32
    return %arg1, %c0_i32, %c0_i32_0 : i32, i32, i32
  }
  func.func @transform_13(%arg0: i32, %arg1: i32) -> (i32, i32) {
    %c0_i32 = arith.constant 0 : i32
    %c0_i32_0 = arith.constant 0 : i32
    %c0_i32_1 = arith.constant 0 : i32
    return %c0_i32, %c0_i32_0 : i32, i32
  }
  func.func @transform_14(%arg0: i32, %arg1: i32) -> (i32, i32) {
    %c0_i32 = arith.constant 0 : i32
    %c0_i32_0 = arith.constant 0 : i32
    %c0_i32_1 = arith.constant 0 : i32
    return %c0_i32, %c0_i32_0 : i32, i32
  }
  func.func @transform_15(%arg0: i32, %arg1: i32) -> (i32, i32, i32) {
    %c0_i32 = arith.constant 0 : i32
    %c0_i32_0 = arith.constant 0 : i32
    %c0_i32_1 = arith.constant 0 : i32
    return %arg0, %c0_i32, %c0_i32_0 : i32, i32, i32
  }
}

</mosaic_0001>

<llo_original>
// kernel: tpu_custom_call.1
$region0: #{tpu_custom_call.1}
  #allocation0 [shape = 'u32[]', space=smem, size = 0x4, offset = 0x4, fixed_abs, tag = 'smem constant byte address 0x4 - core index']
  #allocation1 [shape = 'u32[72,128]{1,0:T(1,128)}', space=vmem, size = 0x9000, scoped, tag = 'internal scratch']
  #allocation2 [shape = 'f32[8,32]{1,0:T(8,128)}', space=vmem, size = 0x1000, scoped, tag = 'scratch operand']
  #allocation3 [shape = 'f32[1,1]{1,0:T(1,128)S(1)}', space=vmem, size = 0x200, scoped, tag = 'scoped memory for tpu_custom_call.1']
  %s0 = inlined_call_operand.hbm [shape: f32[2,8,32], index: 0, kind: input, shape index: {}]
  %s1 = inlined_call_operand.vmem [shape: bf16[2,32,96], index: 1, kind: input, shape index: {}]
  %s2 = inlined_call_operand.vmem [shape: f32[2,1,96], index: 2, kind: input, shape index: {}]
  %s3 = inlined_call_operand.vmem [shape: bf16[2,32,32], index: 3, kind: input, shape index: {}]
  %s4 = inlined_call_operand.vmem [shape: f32[2,1,32], index: 4, kind: input, shape index: {}]
  %s5 = inlined_call_operand.vmem [shape: f32[2,1,32], index: 5, kind: input, shape index: {}]
  %s6 = inlined_call_operand.vmem [shape: f32[2,1,32], index: 6, kind: input, shape index: {}]
  %s7 = inlined_call_operand.vmem [shape: bf16[2,32,64], index: 7, kind: input, shape index: {}]
  %s8 = inlined_call_operand.vmem [shape: f32[2,1,64], index: 8, kind: input, shape index: {}]
  %s9 = inlined_call_operand.vmem [shape: bf16[2,64,32], index: 9, kind: input, shape index: {}]
  %s10 = inlined_call_operand.hbm [shape: f32[2,1,32], index: 10, kind: input, shape index: {}]
  %s11 = inlined_call_operand.hbm [shape: f32[2,1,32], index: 11, kind: input, shape index: {}]
  %s12 = inlined_call_operand.vmem [shape: f32[2,1,32], index: 12, kind: input, shape index: {}]
  %s13 = inlined_call_operand.vmem [shape: f32[32,1], index: 13, kind: input, shape index: {}]
  %s14 = inlined_call_operand.<no memory space> [shape: f32[1,1], index: 14, kind: input, shape index: {}]
  %s15 = inlined_call_operand.vmem [shape: f32[2,1,1], index: 15, kind: output, shape index: {}]
  %s16 = sld [smem:[#allocation0]]
  $region113: #{tpu_custom_call.1} parent=0
    _
  %s18 = ssub.s32 1, %s16
  %s19 = scalar_select 0, %s18, %s16
  %v20 = vstv %s14
  %21 = vst [vmem:[#allocation3] sm:$0x1] %v20
  $region1: #{tpu_custom_call.1} parent=0
    #allocation4 [shape = 'u8[8192]{0}', space=vmem, size = 0x2000, scoped, tag = 'input window, operand 0']
    #allocation5 [shape = 's32[2]{0}', space=sflag, size = 0x8, scoped, tag = 'scoped memory for tpu_custom_call.1']
    #allocation6 [shape = 'u8[1024]{0}', space=vmem, size = 0x400, scoped, tag = 'input window, operand 10']
    #allocation7 [shape = 's32[2]{0}', space=sflag, size = 0x8, scoped, tag = 'scoped memory for tpu_custom_call.1']
    #allocation8 [shape = 'u8[1024]{0}', space=vmem, size = 0x400, scoped, tag = 'input window, operand 11']
    %22 = vsyncpa [#allocation5], 0
    %s23 = scalar_lea.sflag [#allocation5], 1
    %24 = vsyncpa %s23, 0
    %25 = vsyncpa [#allocation7], 0
    %s26 = scalar_lea.sflag [#allocation7], 1
    %27 = vsyncpa %s26, 0
    loop: start=0, step=1, limit=6
    $region2: #{tpu_custom_call.1} parent=1 // loop_pre_header
      _
    $region3: #{tpu_custom_call.1} parent=1 // loop_header
      %s29 = sphi 0, %s33
      %p30 = scmp.ge.s32.totalorder %s29, 6
      %s36 = sphi 0, %s48
      %s37 = sphi 0, %s44
      %s38 = sphi 0, %s36
      %s39 = sphi 0, %s37
      %s40 = sphi 0, %s38
      %s41 = sphi 0, %s39
      %s51 = sphi 0, %s53
      %s54 = sphi 0, %s51
      %s55 = sphi 0, %s54
      %s71 = sphi 0, %s55
      %s77 = sphi 0, %s79
      %s80 = sphi 0, %s77
      %s81 = sphi 0, %s80
      %s97 = sphi 0, %s81
      %s103 = sphi 0, %s105
      %s106 = sphi 0, %s103
      %s107 = sphi 0, %s106
      %s123 = sphi 0, %s107
      %s129 = sphi 0, %s131
      %s132 = sphi 0, %s129
      %s133 = sphi 0, %s132
      %s149 = sphi 0, %s133
      %s155 = sphi 0, %s157
      %s158 = sphi 0, %s155
      %s159 = sphi 0, %s158
      %s175 = sphi 0, %s159
      %s181 = sphi 0, %s183
      %s184 = sphi 0, %s181
      %s185 = sphi 0, %s184
      %s201 = sphi 0, %s185
      %s207 = sphi 0, %s209
      %s210 = sphi 0, %s207
      %s211 = sphi 0, %s210
      %s227 = sphi 0, %s211
      %s233 = sphi 0, %s235
      %s236 = sphi 0, %s233
      %s237 = sphi 0, %s236
      %s253 = sphi 0, %s237
      %s259 = sphi 0, %s261
      %s262 = sphi 0, %s259
      %s263 = sphi 0, %s262
      %s279 = sphi 0, %s263
      %s285 = sphi 0, %s287
      %s288 = sphi 0, %s285
      %s289 = sphi 0, %s288
      %s305 = sphi 0, %s289
      %s311 = sphi 0, %s313
      %s314 = sphi 0, %s311
      %s315 = sphi 0, %s314
      %s331 = sphi 0, %s315
      %s337 = sphi 0, %s339
      %s340 = sphi 0, %s337
      %s341 = sphi 0, %s340
      %s357 = sphi 0, %s341
      %s363 = sphi 0, %s365
      %s366 = sphi 0, %s363
      %s367 = sphi 0, %s366
      %s383 = sphi 0, %s367
      %s387 = sphi 0, %s387
      %s389 = sphi 0, %s387
      %s390 = sphi 0, %s389
      %s404 = sphi 0, %s390
      %s408 = sphi 0, %s408
      %s410 = sphi 0, %s408
      %s411 = sphi 0, %s410
      %s425 = sphi 0, %s411
      %s431 = sphi 0, %s433
      %s434 = sphi 0, %s431
      %s435 = sphi 0, %s434
      %s451 = sphi 0, %s435
    $region4: #{tpu_custom_call.1} parent=1 // loop_header_branch
      %32 = sbr.rel (%p30) target = $region8
    $region5: #{tpu_custom_call.1} parent=1 // loop_body
      %s34 = ssub.s32 %s29, 1
      %s35 = ssub.s32 %s29, 2
      %s42 = sadd.s32 1, %s37
      %p43 = scmp.ge.s32.totalorder %s42, 2
      %s44 = scalar_select %p43, 0, %s42
      %s45 = sadd.s32 1, %s36
      %s46 = scalar_select %p43, %s45, %s36
      %p47 = scmp.ge.s32.totalorder %s46, 2
      %s48 = scalar_select %p47, 0, %s46
      %s49 = ssub.s32 %s36, %s48
      %p50 = scmp.eq.s32.totalorder %s49, 0
      %s52 = sadd.s32 %s51, 1
      %s53 = scalar_select %p50, %s51, %s52
      %p56 = pneg %p50
      %p57 = scmp.eq.s32.totalorder %s29, 3
      %p58 = por %p56, %p57
      %p59 = scmp.ne.s32.totalorder %s51, %s54
      %p60 = scmp.eq.s32.totalorder %s29, 0
      %p61 = por %p59, %p60
      %p62 = scmp.ne.s32.totalorder %s51, %s54
      %p63 = scmp.eq.s32.totalorder %s34, 3
      %p64 = por %p62, %p63
      %p65 = scmp.ne.s32.totalorder %s54, %s55
      %p66 = scmp.eq.s32.totalorder %s34, 0
      %p67 = por %p65, %p66
      %p68 = scmp.ne.s32.totalorder %s54, %s55
      %p69 = scmp.eq.s32.totalorder %s35, 3
      %p70 = por %p68, %p69
      %p72 = scmp.ne.s32.totalorder %s55, %s71
      %p73 = scmp.eq.s32.totalorder %s35, 0
      %p74 = por %p72, %p73
      %s75 = ssub.s32 %s37, %s44
      %p76 = scmp.eq.s32.totalorder %s75, 0
      %s78 = sadd.s32 %s77, 1
      %s79 = scalar_select %p76, %s77, %s78
      %p82 = pneg %p76
      %p83 = scmp.eq.s32.totalorder %s29, 3
      %p84 = por %p82, %p83
      %p85 = scmp.ne.s32.totalorder %s77, %s80
      %p86 = scmp.eq.s32.totalorder %s29, 0
      %p87 = por %p85, %p86
      %p88 = scmp.ne.s32.totalorder %s77, %s80
      %p89 = scmp.eq.s32.totalorder %s34, 3
      %p90 = por %p88, %p89
      %p91 = scmp.ne.s32.totalorder %s80, %s81
      %p92 = scmp.eq.s32.totalorder %s34, 0
      %p93 = por %p91, %p92
      %p94 = scmp.ne.s32.totalorder %s80, %s81
      %p95 = scmp.eq.s32.totalorder %s35, 3
      %p96 = por %p94, %p95
      %p98 = scmp.ne.s32.totalorder %s81, %s97
      %p99 = scmp.eq.s32.totalorder %s35, 0
      %p100 = por %p98, %p99
      %s101 = ssub.s32 %s37, %s44
      %p102 = scmp.eq.s32.totalorder %s101, 0
      %s104 = sadd.s32 %s103, 1
      %s105 = scalar_select %p102, %s103, %s104
      %p108 = pneg %p102
      %p109 = scmp.eq.s32.totalorder %s29, 3
      %p110 = por %p108, %p109
      %p111 = scmp.ne.s32.totalorder %s103, %s106
      %p112 = scmp.eq.s32.totalorder %s29, 0
      %p113 = por %p111, %p112
      %p114 = scmp.ne.s32.totalorder %s103, %s106
      %p115 = scmp.eq.s32.totalorder %s34, 3
      %p116 = por %p114, %p115
      %p117 = scmp.ne.s32.totalorder %s106, %s107
      %p118 = scmp.eq.s32.totalorder %s34, 0
      %p119 = por %p117, %p118
      %p120 = scmp.ne.s32.totalorder %s106, %s107
      %p121 = scmp.eq.s32.totalorder %s35, 3
      %p122 = por %p120, %p121
      %p124 = scmp.ne.s32.totalorder %s107, %s123
      %p125 = scmp.eq.s32.totalorder %s35, 0
      %p126 = por %p124, %p125
      %s127 = ssub.s32 %s37, %s44
      %p128 = scmp.eq.s32.totalorder %s127, 0
      %s130 = sadd.s32 %s129, 1
      %s131 = scalar_select %p128, %s129, %s130
      %p134 = pneg %p128
      %p135 = scmp.eq.s32.totalorder %s29, 3
      %p136 = por %p134, %p135
      %p137 = scmp.ne.s32.totalorder %s129, %s132
      %p138 = scmp.eq.s32.totalorder %s29, 0
      %p139 = por %p137, %p138
      %p140 = scmp.ne.s32.totalorder %s129, %s132
      %p141 = scmp.eq.s32.totalorder %s34, 3
      %p142 = por %p140, %p141
      %p143 = scmp.ne.s32.totalorder %s132, %s133
      %p144 = scmp.eq.s32.totalorder %s34, 0
      %p145 = por %p143, %p144
      %p146 = scmp.ne.s32.totalorder %s132, %s133
      %p147 = scmp.eq.s32.totalorder %s35, 3
      %p148 = por %p146, %p147
      %p150 = scmp.ne.s32.totalorder %s133, %s149
      %p151 = scmp.eq.s32.totalorder %s35, 0
      %p152 = por %p150, %p151
      %s153 = ssub.s32 %s37, %s44
      %p154 = scmp.eq.s32.totalorder %s153, 0
      %s156 = sadd.s32 %s155, 1
      %s157 = scalar_select %p154, %s155, %s156
      %p160 = pneg %p154
      %p161 = scmp.eq.s32.totalorder %s29, 3
      %p162 = por %p160, %p161
      %p163 = scmp.ne.s32.totalorder %s155, %s158
      %p164 = scmp.eq.s32.totalorder %s29, 0
      %p165 = por %p163, %p164
      %p166 = scmp.ne.s32.totalorder %s155, %s158
      %p167 = scmp.eq.s32.totalorder %s34, 3
      %p168 = por %p166, %p167
      %p169 = scmp.ne.s32.totalorder %s158, %s159
      %p170 = scmp.eq.s32.totalorder %s34, 0
      %p171 = por %p169, %p170
      %p172 = scmp.ne.s32.totalorder %s158, %s159
      %p173 = scmp.eq.s32.totalorder %s35, 3
      %p174 = por %p172, %p173
      %p176 = scmp.ne.s32.totalorder %s159, %s175
      %p177 = scmp.eq.s32.totalorder %s35, 0
      %p178 = por %p176, %p177
      %s179 = ssub.s32 %s37, %s44
      %p180 = scmp.eq.s32.totalorder %s179, 0
      %s182 = sadd.s32 %s181, 1
      %s183 = scalar_select %p180, %s181, %s182
      %p186 = pneg %p180
      %p187 = scmp.eq.s32.totalorder %s29, 3
      %p188 = por %p186, %p187
      %p189 = scmp.ne.s32.totalorder %s181, %s184
      %p190 = scmp.eq.s32.totalorder %s29, 0
      %p191 = por %p189, %p190
      %p192 = scmp.ne.s32.totalorder %s181, %s184
      %p193 = scmp.eq.s32.totalorder %s34, 3
      %p194 = por %p192, %p193
      %p195 = scmp.ne.s32.totalorder %s184, %s185
      %p196 = scmp.eq.s32.totalorder %s34, 0
      %p197 = por %p195, %p196
      %p198 = scmp.ne.s32.totalorder %s184, %s185
      %p199 = scmp.eq.s32.totalorder %s35, 3
      %p200 = por %p198, %p199
      %p202 = scmp.ne.s32.totalorder %s185, %s201
      %p203 = scmp.eq.s32.totalorder %s35, 0
      %p204 = por %p202, %p203
      %s205 = ssub.s32 %s37, %s44
      %p206 = scmp.eq.s32.totalorder %s205, 0
      %s208 = sadd.s32 %s207, 1
      %s209 = scalar_select %p206, %s207, %s208
      %p212 = pneg %p206
      %p213 = scmp.eq.s32.totalorder %s29, 3
      %p214 = por %p212, %p213
      %p215 = scmp.ne.s32.totalorder %s207, %s210
      %p216 = scmp.eq.s32.totalorder %s29, 0
      %p217 = por %p215, %p216
      %p218 = scmp.ne.s32.totalorder %s207, %s210
      %p219 = scmp.eq.s32.totalorder %s34, 3
      %p220 = por %p218, %p219
      %p221 = scmp.ne.s32.totalorder %s210, %s211
      %p222 = scmp.eq.s32.totalorder %s34, 0
      %p223 = por %p221, %p222
      %p224 = scmp.ne.s32.totalorder %s210, %s211
      %p225 = scmp.eq.s32.totalorder %s35, 3
      %p226 = por %p224, %p225
      %p228 = scmp.ne.s32.totalorder %s211, %s227
      %p229 = scmp.eq.s32.totalorder %s35, 0
      %p230 = por %p228, %p229
      %s231 = ssub.s32 %s37, %s44
      %p232 = scmp.eq.s32.totalorder %s231, 0
      %s234 = sadd.s32 %s233, 1
      %s235 = scalar_select %p232, %s233, %s234
      %p238 = pneg %p232
      %p239 = scmp.eq.s32.totalorder %s29, 3
      %p240 = por %p238, %p239
      %p241 = scmp.ne.s32.totalorder %s233, %s236
      %p242 = scmp.eq.s32.totalorder %s29, 0
      %p243 = por %p241, %p242
      %p244 = scmp.ne.s32.totalorder %s233, %s236
      %p245 = scmp.eq.s32.totalorder %s34, 3
      %p246 = por %p244, %p245
      %p247 = scmp.ne.s32.totalorder %s236, %s237
      %p248 = scmp.eq.s32.totalorder %s34, 0
      %p249 = por %p247, %p248
      %p250 = scmp.ne.s32.totalorder %s236, %s237
      %p251 = scmp.eq.s32.totalorder %s35, 3
      %p252 = por %p250, %p251
      %p254 = scmp.ne.s32.totalorder %s237, %s253
      %p255 = scmp.eq.s32.totalorder %s35, 0
      %p256 = por %p254, %p255
      %s257 = ssub.s32 %s37, %s44
      %p258 = scmp.eq.s32.totalorder %s257, 0
      %s260 = sadd.s32 %s259, 1
      %s261 = scalar_select %p258, %s259, %s260
      %p264 = pneg %p258
      %p265 = scmp.eq.s32.totalorder %s29, 3
      %p266 = por %p264, %p265
      %p267 = scmp.ne.s32.totalorder %s259, %s262
      %p268 = scmp.eq.s32.totalorder %s29, 0
      %p269 = por %p267, %p268
      %p270 = scmp.ne.s32.totalorder %s259, %s262
      %p271 = scmp.eq.s32.totalorder %s34, 3
      %p272 = por %p270, %p271
      %p273 = scmp.ne.s32.totalorder %s262, %s263
      %p274 = scmp.eq.s32.totalorder %s34, 0
      %p275 = por %p273, %p274
      %p276 = scmp.ne.s32.totalorder %s262, %s263
      %p277 = scmp.eq.s32.totalorder %s35, 3
      %p278 = por %p276, %p277
      %p280 = scmp.ne.s32.totalorder %s263, %s279
      %p281 = scmp.eq.s32.totalorder %s35, 0
      %p282 = por %p280, %p281
      %s283 = ssub.s32 %s37, %s44
      %p284 = scmp.eq.s32.totalorder %s283, 0
      %s286 = sadd.s32 %s285, 1
      %s287 = scalar_select %p284, %s285, %s286
      %p290 = pneg %p284
      %p291 = scmp.eq.s32.totalorder %s29, 3
      %p292 = por %p290, %p291
      %p293 = scmp.ne.s32.totalorder %s285, %s288
      %p294 = scmp.eq.s32.totalorder %s29, 0
      %p295 = por %p293, %p294
      %p296 = scmp.ne.s32.totalorder %s285, %s288
      %p297 = scmp.eq.s32.totalorder %s34, 3
      %p298 = por %p296, %p297
      %p299 = scmp.ne.s32.totalorder %s288, %s289
      %p300 = scmp.eq.s32.totalorder %s34, 0
      %p301 = por %p299, %p300
      %p302 = scmp.ne.s32.totalorder %s288, %s289
      %p303 = scmp.eq.s32.totalorder %s35, 3
      %p304 = por %p302, %p303
      %p306 = scmp.ne.s32.totalorder %s289, %s305
      %p307 = scmp.eq.s32.totalorder %s35, 0
      %p308 = por %p306, %p307
      %s309 = ssub.s32 %s37, %s44
      %p310 = scmp.eq.s32.totalorder %s309, 0
      %s312 = sadd.s32 %s311, 1
      %s313 = scalar_select %p310, %s311, %s312
      %p316 = pneg %p310
      %p317 = scmp.eq.s32.totalorder %s29, 3
      %p318 = por %p316, %p317
      %p319 = scmp.ne.s32.totalorder %s311, %s314
      %p320 = scmp.eq.s32.totalorder %s29, 0
      %p321 = por %p319, %p320
      %p322 = scmp.ne.s32.totalorder %s311, %s314
      %p323 = scmp.eq.s32.totalorder %s34, 3
      %p324 = por %p322, %p323
      %p325 = scmp.ne.s32.totalorder %s314, %s315
      %p326 = scmp.eq.s32.totalorder %s34, 0
      %p327 = por %p325, %p326
      %p328 = scmp.ne.s32.totalorder %s314, %s315
      %p329 = scmp.eq.s32.totalorder %s35, 3
      %p330 = por %p328, %p329
      %p332 = scmp.ne.s32.totalorder %s315, %s331
      %p333 = scmp.eq.s32.totalorder %s35, 0
      %p334 = por %p332, %p333
      %s335 = ssub.s32 %s37, %s44
      %p336 = scmp.eq.s32.totalorder %s335, 0
      %s338 = sadd.s32 %s337, 1
      %s339 = scalar_select %p336, %s337, %s338
      %p342 = pneg %p336
      %p343 = scmp.eq.s32.totalorder %s29, 3
      %p344 = por %p342, %p343
      %p345 = scmp.ne.s32.totalorder %s337, %s340
      %p346 = scmp.eq.s32.totalorder %s29, 0
      %p347 = por %p345, %p346
      %p348 = scmp.ne.s32.totalorder %s337, %s340
      %p349 = scmp.eq.s32.totalorder %s34, 3
      %p350 = por %p348, %p349
      %p351 = scmp.ne.s32.totalorder %s340, %s341
      %p352 = scmp.eq.s32.totalorder %s34, 0
      %p353 = por %p351, %p352
      %p354 = scmp.ne.s32.totalorder %s340, %s341
      %p355 = scmp.eq.s32.totalorder %s35, 3
      %p356 = por %p354, %p355
      %p358 = scmp.ne.s32.totalorder %s341, %s357
      %p359 = scmp.eq.s32.totalorder %s35, 0
      %p360 = por %p358, %p359
      %s361 = ssub.s32 %s37, %s44
      %p362 = scmp.eq.s32.totalorder %s361, 0
      %s364 = sadd.s32 %s363, 1
      %s365 = scalar_select %p362, %s363, %s364
      %p368 = pneg %p362
      %p369 = scmp.eq.s32.totalorder %s29, 3
      %p370 = por %p368, %p369
      %p371 = scmp.ne.s32.totalorder %s363, %s366
      %p372 = scmp.eq.s32.totalorder %s29, 0
      %p373 = por %p371, %p372
      %p374 = scmp.ne.s32.totalorder %s363, %s366
      %p375 = scmp.eq.s32.totalorder %s34, 3
      %p376 = por %p374, %p375
      %p377 = scmp.ne.s32.totalorder %s366, %s367
      %p378 = scmp.eq.s32.totalorder %s34, 0
      %p379 = por %p377, %p378
      %p380 = scmp.ne.s32.totalorder %s366, %s367
      %p381 = scmp.eq.s32.totalorder %s35, 3
      %p382 = por %p380, %p381
      %p384 = scmp.ne.s32.totalorder %s367, %s383
      %p385 = scmp.eq.s32.totalorder %s35, 0
      %p386 = por %p384, %p385
      %s388 = sadd.s32 %s387, 1
      %p391 = scmp.eq.s32.totalorder %s29, 3
      %p392 = scmp.ne.s32.totalorder %s387, %s389
      %p393 = scmp.eq.s32.totalorder %s29, 0
      %p394 = por %p392, %p393
      %p395 = scmp.ne.s32.totalorder %s387, %s389
      %p396 = scmp.eq.s32.totalorder %s34, 3
      %p397 = por %p395, %p396
      %p398 = scmp.ne.s32.totalorder %s389, %s390
      %p399 = scmp.eq.s32.totalorder %s34, 0
      %p400 = por %p398, %p399
      %p401 = scmp.ne.s32.totalorder %s389, %s390
      %p402 = scmp.eq.s32.totalorder %s35, 3
      %p403 = por %p401, %p402
      %p405 = scmp.ne.s32.totalorder %s390, %s404
      %p406 = scmp.eq.s32.totalorder %s35, 0
      %p407 = por %p405, %p406
      %s409 = sadd.s32 %s408, 1
      %p412 = scmp.eq.s32.totalorder %s29, 3
      %p413 = scmp.ne.s32.totalorder %s408, %s410
      %p414 = scmp.eq.s32.totalorder %s29, 0
      %p415 = por %p413, %p414
      %p416 = scmp.ne.s32.totalorder %s408, %s410
      %p417 = scmp.eq.s32.totalorder %s34, 3
      %p418 = por %p416, %p417
      %p419 = scmp.ne.s32.totalorder %s410, %s411
      %p420 = scmp.eq.s32.totalorder %s34, 0
      %p421 = por %p419, %p420
      %p422 = scmp.ne.s32.totalorder %s410, %s411
      %p423 = scmp.eq.s32.totalorder %s35, 3
      %p424 = por %p422, %p423
      %p426 = scmp.ne.s32.totalorder %s411, %s425
      %p427 = scmp.eq.s32.totalorder %s35, 0
      %p428 = por %p426, %p427
      %s429 = ssub.s32 %s36, %s48
      %p430 = scmp.eq.s32.totalorder %s429, 0
      %s432 = sadd.s32 %s431, 1
      %s433 = scalar_select %p430, %s431, %s432
      %p436 = pneg %p430
      %p437 = scmp.eq.s32.totalorder %s29, 3
      %p438 = por %p436, %p437
      %p439 = scmp.ne.s32.totalorder %s431, %s434
      %p440 = scmp.eq.s32.totalorder %s29, 0
      %p441 = por %p439, %p440
      %p442 = scmp.ne.s32.totalorder %s431, %s434
      %p443 = scmp.eq.s32.totalorder %s34, 3
      %p444 = por %p442, %p443
      %p445 = scmp.ne.s32.totalorder %s434, %s435
      %p446 = scmp.eq.s32.totalorder %s34, 0
      %p447 = por %p445, %p446
      %p448 = scmp.ne.s32.totalorder %s434, %s435
      %p449 = scmp.eq.s32.totalorder %s35, 3
      %p450 = por %p448, %p449
      %p452 = scmp.ne.s32.totalorder %s435, %s451
      %p453 = scmp.eq.s32.totalorder %s35, 0
      %p454 = por %p452, %p453
      %p455 = scmp.le.s32.totalorder 1, %s29
      %p456 = scmp.lt.s32.totalorder %s29, 5
      %p457 = pnand %p455, %p456
      %p458 = pneg %p457
      // Predicated region
      $region9: #{tpu_custom_call.1} parent=5 // pred_check
        _
      $region10: #{tpu_custom_call.1} parent=5 // pred_check_branch
        %460 = sbr.rel (%p457) target = $region12
      $region11: #{tpu_custom_call.1} parent=5 // pred_region
        %s461 = ssub.s32 %s29, 1
        // Predicated region
        $region13: #{tpu_custom_call.1} parent=11 // pred_check
          %p462 = pneg %p400
        $region14: #{tpu_custom_call.1} parent=11 // pred_check_branch
          %464 = sbr.rel (%p462) target = $region16
        $region15: #{tpu_custom_call.1} parent=11 // pred_region
          _
        $region16: #{tpu_custom_call.1} parent=11 // pred_fallthru
          _
        // Predicated region
        $region17: #{tpu_custom_call.1} parent=11 // pred_check
          %p465 = pneg %p421
        $region18: #{tpu_custom_call.1} parent=11 // pred_check_branch
          %467 = sbr.rel (%p465) target = $region20
        $region19: #{tpu_custom_call.1} parent=11 // pred_region
          _
        $region20: #{tpu_custom_call.1} parent=11 // pred_fallthru
          _
      $region12: #{tpu_custom_call.1} parent=5 // pred_fallthru
        _
      %p468 = scmp.lt.s32.totalorder %s29, 4
      // Predicated region
      $region21: #{tpu_custom_call.1} parent=5 // pred_check
        %p469 = pneg %p468
      $region22: #{tpu_custom_call.1} parent=5 // pred_check_branch
        %471 = sbr.rel (%p469) target = $region24
      $region23: #{tpu_custom_call.1} parent=5 // pred_region
        // Predicated region
        $region25: #{tpu_custom_call.1} parent=23 // pred_check
          %p472 = pneg %p61
        $region26: #{tpu_custom_call.1} parent=23 // pred_check_branch
          %474 = sbr.rel (%p472) target = $region28
        $region27: #{tpu_custom_call.1} parent=23 // pred_region
          %s475 = sand.u32 %s51, 1
          %s476 = scalar_lea.sflag [#allocation5], %s475
          %s477 = sand.u32 %s51, 1
          %s478 = smul.addr %s477, 8
          %s479 = scalar_lea.vmem [#allocation4], %s478
          %481 = vsyncadd %s476, 0
          %s482 = smul.addr %s36, 8
          %s483 = scalar_lea.hbm %s0, %s482
          %s485 = sshll.u32 %s483, 4
          %s486 = int_to_ptr.hbm [resolvable:$true] %s485
          %s487 = sshll.u32 %s479, 4
          %s488 = int_to_ptr.vmem [resolvable:$true] %s487
          %490 = dma.hbm_to_vmem [thread:$0]  %s486, 128, %s488, %s476
        $region28: #{tpu_custom_call.1} parent=23 // pred_fallthru
          _
        // Predicated region
        $region29: #{tpu_custom_call.1} parent=23 // pred_check
          %p491 = pneg %p87
        $region30: #{tpu_custom_call.1} parent=23 // pred_check_branch
          %493 = sbr.rel (%p491) target = $region32
        $region31: #{tpu_custom_call.1} parent=23 // pred_region
          %p494 = scmp.lt.s32.totalorder %s37, 1
          %s495 = scalar_select %p494, %s37, 1
          %s496 = smul.addr %s495, 4
          %s497 = smul.addr %s496, 4
          %s498 = scalar_lea.vmem %s1, %s497
        $region32: #{tpu_custom_call.1} parent=23 // pred_fallthru
          _
        // Predicated region
        $region33: #{tpu_custom_call.1} parent=23 // pred_check
          %p499 = pneg %p113
        $region34: #{tpu_custom_call.1} parent=23 // pred_check_branch
          %501 = sbr.rel (%p499) target = $region36
        $region35: #{tpu_custom_call.1} parent=23 // pred_region
          %p502 = scmp.lt.s32.totalorder %s37, 1
          %s503 = scalar_select %p502, %s37, 1
          %s504 = scalar_lea.vmem %s2, %s503
        $region36: #{tpu_custom_call.1} parent=23 // pred_fallthru
          _
        // Predicated region
        $region37: #{tpu_custom_call.1} parent=23 // pred_check
          %p505 = pneg %p139
        $region38: #{tpu_custom_call.1} parent=23 // pred_check_branch
          %507 = sbr.rel (%p505) target = $region40
        $region39: #{tpu_custom_call.1} parent=23 // pred_region
          %p508 = scmp.lt.s32.totalorder %s37, 1
          %s509 = scalar_select %p508, %s37, 1
          %s510 = smul.addr %s509, 4
          %s511 = smul.addr %s510, 4
          %s512 = scalar_lea.vmem %s3, %s511
        $region40: #{tpu_custom_call.1} parent=23 // pred_fallthru
          _
        // Predicated region
        $region41: #{tpu_custom_call.1} parent=23 // pred_check
          %p513 = pneg %p165
        $region42: #{tpu_custom_call.1} parent=23 // pred_check_branch
          %515 = sbr.rel (%p513) target = $region44
        $region43: #{tpu_custom_call.1} parent=23 // pred_region
          %p516 = scmp.lt.s32.totalorder %s37, 1
          %s517 = scalar_select %p516, %s37, 1
          %s518 = scalar_lea.vmem %s4, %s517
        $region44: #{tpu_custom_call.1} parent=23 // pred_fallthru
          _
        // Predicated region
        $region45: #{tpu_custom_call.1} parent=23 // pred_check
          %p519 = pneg %p191
        $region46: #{tpu_custom_call.1} parent=23 // pred_check_branch
          %521 = sbr.rel (%p519) target = $region48
        $region47: #{tpu_custom_call.1} parent=23 // pred_region
          %p522 = scmp.lt.s32.totalorder %s37, 1
          %s523 = scalar_select %p522, %s37, 1
          %s524 = scalar_lea.vmem %s5, %s523
        $region48: #{tpu_custom_call.1} parent=23 // pred_fallthru
          _
        // Predicated region
        $region49: #{tpu_custom_call.1} parent=23 // pred_check
          %p525 = pneg %p217
        $region50: #{tpu_custom_call.1} parent=23 // pred_check_branch
          %527 = sbr.rel (%p525) target = $region52
        $region51: #{tpu_custom_call.1} parent=23 // pred_region
          %p528 = scmp.lt.s32.totalorder %s37, 1
          %s529 = scalar_select %p528, %s37, 1
          %s530 = scalar_lea.vmem %s6, %s529
        $region52: #{tpu_custom_call.1} parent=23 // pred_fallthru
          _
        // Predicated region
        $region53: #{tpu_custom_call.1} parent=23 // pred_check
          %p531 = pneg %p243
        $region54: #{tpu_custom_call.1} parent=23 // pred_check_branch
          %533 = sbr.rel (%p531) target = $region56
        $region55: #{tpu_custom_call.1} parent=23 // pred_region
          %p534 = scmp.lt.s32.totalorder %s37, 1
          %s535 = scalar_select %p534, %s37, 1
          %s536 = smul.addr %s535, 4
          %s537 = smul.addr %s536, 4
          %s538 = scalar_lea.vmem %s7, %s537
        $region56: #{tpu_custom_call.1} parent=23 // pred_fallthru
          _
        // Predicated region
        $region57: #{tpu_custom_call.1} parent=23 // pred_check
          %p539 = pneg %p269
        $region58: #{tpu_custom_call.1} parent=23 // pred_check_branch
          %541 = sbr.rel (%p539) target = $region60
        $region59: #{tpu_custom_call.1} parent=23 // pred_region
          %p542 = scmp.lt.s32.totalorder %s37, 1
          %s543 = scalar_select %p542, %s37, 1
          %s544 = scalar_lea.vmem %s8, %s543
        $region60: #{tpu_custom_call.1} parent=23 // pred_fallthru
          _
        // Predicated region
        $region61: #{tpu_custom_call.1} parent=23 // pred_check
          %p545 = pneg %p295
        $region62: #{tpu_custom_call.1} parent=23 // pred_check_branch
          %547 = sbr.rel (%p545) target = $region64
        $region63: #{tpu_custom_call.1} parent=23 // pred_region
          %p548 = scmp.lt.s32.totalorder %s37, 1
          %s549 = scalar_select %p548, %s37, 1
          %s550 = smul.addr %s549, 8
          %s551 = smul.addr %s550, 4
          %s552 = scalar_lea.vmem %s9, %s551
        $region64: #{tpu_custom_call.1} parent=23 // pred_fallthru
          _
        // Predicated region
        $region65: #{tpu_custom_call.1} parent=23 // pred_check
          %p553 = pneg %p321
        $region66: #{tpu_custom_call.1} parent=23 // pred_check_branch
          %555 = sbr.rel (%p553) target = $region68
        $region67: #{tpu_custom_call.1} parent=23 // pred_region
          %s556 = sand.u32 %s29, 1
          %s557 = scalar_lea.sflag [#allocation7], %s556
          %s558 = sand.u32 %s311, 1
          %s559 = scalar_lea.vmem [#allocation6], %s558
          %561 = vsyncadd %s557, 0
          %s562 = scalar_lea.hbm %s10, %s37
          %s564 = sshll.u32 %s562, 4
          %s565 = int_to_ptr.hbm [resolvable:$true] %s564
          %s566 = sshll.u32 %s559, 4
          %s567 = int_to_ptr.vmem [resolvable:$true] %s566
          %569 = dma.hbm_to_vmem [thread:$0]  %s565, 16, %s567, %s557
        $region68: #{tpu_custom_call.1} parent=23 // pred_fallthru
          _
        // Predicated region
        $region69: #{tpu_custom_call.1} parent=23 // pred_check
          %p570 = pneg %p347
        $region70: #{tpu_custom_call.1} parent=23 // pred_check_branch
          %572 = sbr.rel (%p570) target = $region72
        $region71: #{tpu_custom_call.1} parent=23 // pred_region
          %s573 = sand.u32 %s29, 1
          %s574 = scalar_lea.sflag [#allocation7], %s573
          %s575 = sand.u32 %s337, 1
          %s576 = scalar_lea.vmem [#allocation8], %s575
          %578 = vsyncadd %s574, 0
          %s579 = scalar_lea.hbm %s11, %s37
          %s581 = sshll.u32 %s579, 4
          %s582 = int_to_ptr.hbm [resolvable:$true] %s581
          %s583 = sshll.u32 %s576, 4
          %s584 = int_to_ptr.vmem [resolvable:$true] %s583
          %586 = dma.hbm_to_vmem [thread:$0]  %s582, 16, %s584, %s574
        $region72: #{tpu_custom_call.1} parent=23 // pred_fallthru
          _
        // Predicated region
        $region73: #{tpu_custom_call.1} parent=23 // pred_check
          %p587 = pneg %p373
        $region74: #{tpu_custom_call.1} parent=23 // pred_check_branch
          %589 = sbr.rel (%p587) target = $region76
        $region75: #{tpu_custom_call.1} parent=23 // pred_region
          %p590 = scmp.lt.s32.totalorder %s37, 1
          %s591 = scalar_select %p590, %s37, 1
          %s592 = scalar_lea.vmem %s12, %s591
        $region76: #{tpu_custom_call.1} parent=23 // pred_fallthru
          _
      $region24: #{tpu_custom_call.1} parent=5 // pred_fallthru
        _
      %p593 = scmp.le.s32.totalorder 1, %s29
      %p594 = scmp.lt.s32.totalorder %s29, 5
      %p595 = pnand %p593, %p594
      %p596 = pneg %p595
      // Predicated region
      $region77: #{tpu_custom_call.1} parent=5 // pred_check
        _
      $region78: #{tpu_custom_call.1} parent=5 // pred_check_branch
        %598 = sbr.rel (%p595) target = $region80
      $region79: #{tpu_custom_call.1} parent=5 // pred_region
        %s599 = ssub.s32 %s29, 1
        %s600 = sand.u32 %s54, 1
        %s601 = scalar_lea.sflag [#allocation5], %s600
        %s602 = sand.u32 %s54, 1
        %s603 = smul.addr %s602, 8
        %s604 = scalar_lea.vmem [#allocation4], %s603
        // Predicated region
        $region81: #{tpu_custom_call.1} parent=79 // pred_check
          %p605 = pneg %p67
        $region82: #{tpu_custom_call.1} parent=79 // pred_check_branch
          %607 = sbr.rel (%p605) target = $region84
        $region83: #{tpu_custom_call.1} parent=79 // pred_region
          %609 = dma.done %s601, 128
        $region84: #{tpu_custom_call.1} parent=79 // pred_fallthru
          _
        %s610 = sand.u32 %s34, 1
        %s611 = scalar_lea.sflag [#allocation7], %s610
        %s612 = sand.u32 %s314, 1
        %s613 = scalar_lea.vmem [#allocation6], %s612
        // Predicated region
        $region85: #{tpu_custom_call.1} parent=79 // pred_check
          %p614 = pneg %p327
        $region86: #{tpu_custom_call.1} parent=79 // pred_check_branch
          %616 = sbr.rel (%p614) target = $region88
        $region87: #{tpu_custom_call.1} parent=79 // pred_region
          %618 = dma.done %s611, 16
        $region88: #{tpu_custom_call.1} parent=79 // pred_fallthru
          _
        %s619 = sand.u32 %s34, 1
        %s620 = scalar_lea.sflag [#allocation7], %s619
        %s621 = sand.u32 %s340, 1
        %s622 = scalar_lea.vmem [#allocation8], %s621
        // Predicated region
        $region89: #{tpu_custom_call.1} parent=79 // pred_check
          %p623 = pneg %p353
        $region90: #{tpu_custom_call.1} parent=79 // pred_check_branch
          %625 = sbr.rel (%p623) target = $region92
        $region91: #{tpu_custom_call.1} parent=79 // pred_region
          %627 = dma.done %s620, 16
        $region92: #{tpu_custom_call.1} parent=79 // pred_fallthru
          _
        %s628 = sand.u32 %s54, 1
        %s629 = scalar_lea.sflag [#allocation5], %s628
        %s630 = sand.u32 %s54, 1
        %s631 = smul.addr %s630, 8
        %s632 = scalar_lea.vmem [#allocation4], %s631
        %p633 = pneg %p67
        %p634 = pneg %p64
        %p635 = scmp.lt.s32.totalorder %s39, 1
        %s636 = scalar_select %p635, %s39, 1
        %s637 = smul.addr %s636, 4
        %s638 = smul.addr %s637, 4
        %s639 = scalar_lea.vmem %s1, %s638
        %p640 = pneg %p93
        %p641 = pneg %p90
        %p642 = scmp.lt.s32.totalorder %s39, 1
        %s643 = scalar_select %p642, %s39, 1
        %s644 = scalar_lea.vmem %s2, %s643
        %p645 = pneg %p119
        %p646 = pneg %p116
        %p647 = scmp.lt.s32.totalorder %s39, 1
        %s648 = scalar_select %p647, %s39, 1
        %s649 = smul.addr %s648, 4
        %s650 = smul.addr %s649, 4
        %s651 = scalar_lea.vmem %s3, %s650
        %p652 = pneg %p145
        %p653 = pneg %p142
        %p654 = scmp.lt.s32.totalorder %s39, 1
        %s655 = scalar_select %p654, %s39, 1
        %s656 = scalar_lea.vmem %s4, %s655
        %p657 = pneg %p171
        %p658 = pneg %p168
        %p659 = scmp.lt.s32.totalorder %s39, 1
        %s660 = scalar_select %p659, %s39, 1
        %s661 = scalar_lea.vmem %s5, %s660
        %p662 = pneg %p197
        %p663 = pneg %p194
        %p664 = scmp.lt.s32.totalorder %s39, 1
        %s665 = scalar_select %p664, %s39, 1
        %s666 = scalar_lea.vmem %s6, %s665
        %p667 = pneg %p223
        %p668 = pneg %p220
        %p669 = scmp.lt.s32.totalorder %s39, 1
        %s670 = scalar_select %p669, %s39, 1
        %s671 = smul.addr %s670, 4
        %s672 = smul.addr %s671, 4
        %s673 = scalar_lea.vmem %s7, %s672
        %p674 = pneg %p249
        %p675 = pneg %p246
        %p676 = scmp.lt.s32.totalorder %s39, 1
        %s677 = scalar_select %p676, %s39, 1
        %s678 = scalar_lea.vmem %s8, %s677
        %p679 = pneg %p275
        %p680 = pneg %p272
        %p681 = scmp.lt.s32.totalorder %s39, 1
        %s682 = scalar_select %p681, %s39, 1
        %s683 = smul.addr %s682, 8
        %s684 = smul.addr %s683, 4
        %s685 = scalar_lea.vmem %s9, %s684
        %p686 = pneg %p301
        %p687 = pneg %p298
        %s688 = sand.u32 %s34, 1
        %s689 = scalar_lea.sflag [#allocation7], %s688
        %s690 = sand.u32 %s314, 1
        %s691 = scalar_lea.vmem [#allocation6], %s690
        %p692 = pneg %p327
        %p693 = pneg %p324
        %s694 = sand.u32 %s34, 1
        %s695 = scalar_lea.sflag [#allocation7], %s694
        %s696 = sand.u32 %s340, 1
        %s697 = scalar_lea.vmem [#allocation8], %s696
        %p698 = pneg %p353
        %p699 = pneg %p350
        %p700 = scmp.lt.s32.totalorder %s39, 1
        %s701 = scalar_select %p700, %s39, 1
        %s702 = scalar_lea.vmem %s12, %s701
        %p703 = pneg %p379
        %p704 = pneg %p376
        %p705 = pneg %p400
        %p706 = pneg %p397
        %p707 = pneg %p421
        %p708 = pneg %p418
        %p709 = pneg %p447
        %p710 = pneg %p444
        %p711 = scmp.lt.s32.totalorder %s38, 1
        %s712 = scalar_select %p711, %s38, 1
        %s713 = scalar_lea.vmem %s15, %s712
        %p714 = scmp.lt.s32.totalorder %s39, 1
        %s715 = scalar_select %p714, %s39, 1
        %s716 = smul.addr %s715, 4
        %s717 = smul.addr %s716, 4
        %s718 = scalar_lea.vmem %s1, %s717
        %p719 = scmp.lt.s32.totalorder %s39, 1
        %s720 = scalar_select %p719, %s39, 1
        %s721 = scalar_lea.vmem %s2, %s720
        %p722 = scmp.lt.s32.totalorder %s39, 1
        %s723 = scalar_select %p722, %s39, 1
        %s724 = smul.addr %s723, 4
        %s725 = smul.addr %s724, 4
        %s726 = scalar_lea.vmem %s3, %s725
        %p727 = scmp.lt.s32.totalorder %s39, 1
        %s728 = scalar_select %p727, %s39, 1
        %s729 = scalar_lea.vmem %s4, %s728
        %p730 = scmp.lt.s32.totalorder %s39, 1
        %s731 = scalar_select %p730, %s39, 1
        %s732 = scalar_lea.vmem %s5, %s731
        %p733 = scmp.lt.s32.totalorder %s39, 1
        %s734 = scalar_select %p733, %s39, 1
        %s735 = scalar_lea.vmem %s6, %s734
        %p736 = scmp.lt.s32.totalorder %s39, 1
        %s737 = scalar_select %p736, %s39, 1
        %s738 = smul.addr %s737, 4
        %s739 = smul.addr %s738, 4
        %s740 = scalar_lea.vmem %s7, %s739
        %p741 = scmp.lt.s32.totalorder %s39, 1
        %s742 = scalar_select %p741, %s39, 1
        %s743 = scalar_lea.vmem %s8, %s742
        %p744 = scmp.lt.s32.totalorder %s39, 1
        %s745 = scalar_select %p744, %s39, 1
        %s746 = smul.addr %s745, 8
        %s747 = smul.addr %s746, 4
        %s748 = scalar_lea.vmem %s9, %s747
        %p749 = scmp.lt.s32.totalorder %s39, 1
        %s750 = scalar_select %p749, %s39, 1
        %s751 = scalar_lea.vmem %s12, %s750
        %p752 = scmp.lt.s32.totalorder %s38, 1
        %s753 = scalar_select %p752, %s38, 1
        %s754 = scalar_lea.vmem %s15, %s753
        %p756 = scmp.eq.s32.totalorder %s39, 0
        // Predicated region
        $region93: #{tpu_custom_call.1} parent=79 // pred_check
          %p757 = pneg %p756
        $region94: #{tpu_custom_call.1} parent=79 // pred_check_branch
          %759 = sbr.rel (%p757) target = $region96
        $region95: #{tpu_custom_call.1} parent=79 // pred_region
          %v760 = vld [vmem:[%s604] sm:$0xff]
          %vm761 = vcmask 261120
          %762 = vst.msk [vmem:[#allocation2] sm:$0xff] %vm761, %v760
        $region96: #{tpu_custom_call.1} parent=79 // pred_fallthru
          _
        %v763 = vld [vmem:[#allocation2] sm:$0xff]
        %v764 = vpack.c.bf16 %v763, %v763
        %v765 = vld [vmem:[%s718] sm:$0xf]
        %v766 = vld [vmem:[%s718 + $0x4] sm:$0xf]
        %v767 = vld [vmem:[%s718 + $0x8] sm:$0xf]
        %v768 = vld [vmem:[%s718 + $0xc] sm:$0xf]
        %v769 = vld [vmem:[%s721] sm:$0x1]
        %v771 = vperm.slane %v769, 0
        %v777 = vunpack.c.l.b16 %v765
        %v778 = vunpack.c.l.b16 %v766
        %v779 = vunpack.c.l.b16 %v767
        %v780 = vunpack.c.l.b16 %v768
        %v781 = vpack.c.b16 %v778, %v777
        %v782 = vpack.c.b16 %v780, %v779
        %vm785 = vcmask 261120
        %v787 = vsel %vm785, %v764, 0
        %789 = vmatpush.bf16.msra.mxu0 0
        %790 = vmatpush.bf16.msra.mxu0 0
        %791 = vmatpush.bf16.msra.mxu0 0
        %792 = vmatpush.bf16.msra.mxu0 0
        %793 = vmatpush.bf16.msra.mxu0 0
        %794 = vmatpush.bf16.msra.mxu0 0
        %795 = vmatpush.bf16.msra.mxu0 %v782
        %796 = vmatpush.bf16.msra.mxu0 %v781
        %797 = vmatmul.bf16.gmra.mxu0 %v787
        %v798 = vpop.f32.mrf.mxu0
        %v799 = vadd.f32 %v771, %v798
        %v800 = vpop.f32.mrf.mxu0
        %801 = vdwg.mxu0
        %v802 = vmul.f32 %v799, 0.35355338
        %v803 = vpack.c.bf16 %v802, %v802
        %v804 = vpack.c.bf16 %v799, %v799
        %806 = vrot.lane.b32.xlu0 %v803, 120
        %v807 = vpop.permute.xlu0 %806
        %808 = vrot.lane.b32.xlu0 %v803, 112
        %v809 = vpop.permute.xlu0 %808
        %810 = vrot.lane.b32.xlu0 %v803, 104
        %v811 = vpop.permute.xlu0 %810
        %813 = vrot.lane.b32.xlu0 %v804, 120
        %v814 = vpop.permute.xlu0 %813
        %815 = vrot.lane.b32.xlu0 %v804, 112
        %v816 = vpop.permute.xlu0 %815
        %817 = vrot.lane.b32.xlu0 %v804, 104
        %v818 = vpop.permute.xlu0 %817
        %v819 = vlaneseq
        %v820 = vshrl.u32 %v819, 7
        %v821 = vlaneseq
        %v822 = vand.u32 %v821, 127
        %vm823 = vcmp.le.s32.totalorder %v822, %v820
        %v824 = vsel %vm823, 0.0, -1e+09
        %v825 = vunpack.c.l.b16 %v804
        %v826 = vpack.c.b16 %v825, %v825
        %827 = vrot.lane.b32.xlu0 %v826, 96
        %v828 = vpop.permute.xlu0 %827
        %vm829 = vcmask 64512
        %v831 = vsel %vm829, %v803, 0
        %v834 = vsel %vm829, %v828, 0
        %836 = vmatpush.bf16.xpose.msra.mxu0 0
        %837 = vmatpush.bf16.xpose.msra.mxu0 0
        %838 = vmatpush.bf16.xpose.msra.mxu0 0
        %839 = vmatpush.bf16.xpose.msra.mxu0 0
        %840 = vmatpush.bf16.xpose.msra.mxu0 0
        %841 = vmatpush.bf16.xpose.msra.mxu0 0
        %842 = vmatpush.bf16.xpose.msra.mxu0 0
        %843 = vmatpush.bf16.xpose.msra.mxu0 %v834
        %844 = vmatmul.bf16.gmra.mxu0 %v831
        %v845 = vpop.f32.mrf.mxu0
        %v846 = vadd.f32 %v824, %v845
        %v847 = vpop.f32.mrf.mxu0
        %848 = vdwg.mxu0
        %v849 = vunpack.c.l.b16 %v814
        %v850 = vpack.c.b16 %v849, %v849
        %851 = vrot.lane.b32.xlu0 %v850, 96
        %v852 = vpop.permute.xlu0 %851
        %v854 = vsel %vm829, %v807, 0
        %v857 = vsel %vm829, %v852, 0
        %859 = vmatpush.bf16.xpose.msra.mxu0 0
        %860 = vmatpush.bf16.xpose.msra.mxu0 0
        %861 = vmatpush.bf16.xpose.msra.mxu0 0
        %862 = vmatpush.bf16.xpose.msra.mxu0 0
        %863 = vmatpush.bf16.xpose.msra.mxu0 0
        %864 = vmatpush.bf16.xpose.msra.mxu0 0
        %865 = vmatpush.bf16.xpose.msra.mxu0 0
        %866 = vmatpush.bf16.xpose.msra.mxu0 %v857
        %867 = vmatmul.bf16.gmra.mxu0 %v854
        %v868 = vpop.f32.mrf.mxu0
        %v869 = vadd.f32 %v824, %v868
        %v870 = vpop.f32.mrf.mxu0
        %871 = vdwg.mxu0
        %v872 = vunpack.c.l.b16 %v816
        %v873 = vpack.c.b16 %v872, %v872
        %874 = vrot.lane.b32.xlu0 %v873, 96
        %v875 = vpop.permute.xlu0 %874
        %v877 = vsel %vm829, %v809, 0
        %v880 = vsel %vm829, %v875, 0
        %882 = vmatpush.bf16.xpose.msra.mxu0 0
        %883 = vmatpush.bf16.xpose.msra.mxu0 0
        %884 = vmatpush.bf16.xpose.msra.mxu0 0
        %885 = vmatpush.bf16.xpose.msra.mxu0 0
        %886 = vmatpush.bf16.xpose.msra.mxu0 0
        %887 = vmatpush.bf16.xpose.msra.mxu0 0
        %888 = vmatpush.bf16.xpose.msra.mxu0 0
        %889 = vmatpush.bf16.xpose.msra.mxu0 %v880
        %890 = vmatmul.bf16.gmra.mxu0 %v877
        %v891 = vpop.f32.mrf.mxu0
        %v892 = vadd.f32 %v824, %v891
        %v893 = vpop.f32.mrf.mxu0
        %894 = vdwg.mxu0
        %v895 = vunpack.c.l.b16 %v818
        %v896 = vpack.c.b16 %v895, %v895
        %897 = vrot.lane.b32.xlu0 %v896, 96
        %v898 = vpop.permute.xlu0 %897
        %v900 = vsel %vm829, %v811, 0
        %v903 = vsel %vm829, %v898, 0
        %905 = vmatpush.bf16.xpose.msra.mxu0 0
        %906 = vmatpush.bf16.xpose.msra.mxu0 0
        %907 = vmatpush.bf16.xpose.msra.mxu0 0
        %908 = vmatpush.bf16.xpose.msra.mxu0 0
        %909 = vmatpush.bf16.xpose.msra.mxu0 0
        %910 = vmatpush.bf16.xpose.msra.mxu0 0
        %911 = vmatpush.bf16.xpose.msra.mxu0 0
        %912 = vmatpush.bf16.xpose.msra.mxu0 %v903
        %913 = vmatmul.bf16.gmra.mxu0 %v900
        %v914 = vpop.f32.mrf.mxu0
        %v915 = vadd.f32 %v824, %v914
        %v916 = vpop.f32.mrf.mxu0
        %917 = vdwg.mxu0
        %v918 = vsel %vm829, %v846, -inf
        %919 = vmax.xlane.f32.xlu0 %v918
        %v920 = vpop.xlane.xlu0 %919
        %v921 = vsel %vm829, %v869, -inf
        %922 = vmax.xlane.f32.xlu0 %v921
        %v923 = vpop.xlane.xlu0 %922
        %v924 = vsel %vm829, %v892, -inf
        %925 = vmax.xlane.f32.xlu0 %v924
        %v926 = vpop.xlane.xlu0 %925
        %v927 = vsel %vm829, %v915, -inf
        %928 = vmax.xlane.f32.xlu0 %v927
        %v929 = vpop.xlane.xlu0 %928
        %v930 = vsub.f32 %v846, %v920
        %v931 = vsub.f32 %v869, %v923
        %v932 = vsub.f32 %v892, %v926
        %v933 = vsub.f32 %v915, %v929
        %v934 = vmul.f32 %v930, 1.442695
        %v935 = vpow.pop %v934
        %v936 = vmul.f32 %v931, 1.442695
        %v937 = vpow.pop %v936
        %v938 = vmul.f32 %v932, 1.442695
        %v939 = vpow.pop %v938
        %v940 = vmul.f32 %v933, 1.442695
        %v941 = vpow.pop %v940
        %v942 = vsel %vm829, %v935, 0.0
        %943 = vadd.xlane.f32.xlu0 %v942
        %v944 = vpop.xlane.xlu0 %943
        %v945 = vsel %vm829, %v937, 0.0
        %946 = vadd.xlane.f32.xlu0 %v945
        %v947 = vpop.xlane.xlu0 %946
        %v948 = vsel %vm829, %v939, 0.0
        %949 = vadd.xlane.f32.xlu0 %v948
        %v950 = vpop.xlane.xlu0 %949
        %v951 = vsel %vm829, %v941, 0.0
        %952 = vadd.xlane.f32.xlu0 %v951
        %v953 = vpop.xlane.xlu0 %952
        %v954 = vrcp.pop %v944
        %v955 = vrcp.pop %v947
        %v956 = vrcp.pop %v950
        %v957 = vrcp.pop %v953
        %v958 = vmul.f32 %v935, %v954
        %v959 = vmul.f32 %v937, %v955
        %v960 = vmul.f32 %v939, %v956
        %v961 = vmul.f32 %v941, %v957
        %v962 = vpack.c.bf16 %v958, %v958
        %v963 = vpack.c.bf16 %v959, %v959
        %v964 = vpack.c.bf16 %v960, %v960
        %v965 = vpack.c.bf16 %v961, %v961
        %966 = vrot.lane.b32.xlu0 %v826, 64
        %v967 = vpop.permute.xlu0 %966
        %v969 = vsel %vm829, %v962, 0
        %vm971 = vcmask 1043456
        %v973 = vsel %vm971, %v967, 0
        %975 = vmatpush.bf16.msra.mxu0 0
        %976 = vmatpush.bf16.msra.mxu0 0
        %977 = vmatpush.bf16.msra.mxu0 0
        %978 = vmatpush.bf16.msra.mxu0 0
        %979 = vmatpush.bf16.msra.mxu0 0
        %980 = vmatpush.bf16.msra.mxu0 0
        %981 = vmatpush.bf16.msra.mxu0 0
        %982 = vmatpush.bf16.msra.mxu0 %v973
        %983 = vmatmul.bf16.gmra.mxu0 %v969
        %v984 = vpop.f32.mrf.mxu0
        %v985 = vadd.f32 0.0, %v984
        %v986 = vpop.f32.mrf.mxu0
        %987 = vdwg.mxu0
        %988 = vrot.lane.b32.xlu0 %v850, 64
        %v989 = vpop.permute.xlu0 %988
        %v991 = vsel %vm829, %v963, 0
        %v994 = vsel %vm971, %v989, 0
        %996 = vmatpush.bf16.msra.mxu0 0
        %997 = vmatpush.bf16.msra.mxu0 0
        %998 = vmatpush.bf16.msra.mxu0 0
        %999 = vmatpush.bf16.msra.mxu0 0
        %1000 = vmatpush.bf16.msra.mxu0 0
        %1001 = vmatpush.bf16.msra.mxu0 0
        %1002 = vmatpush.bf16.msra.mxu0 0
        %1003 = vmatpush.bf16.msra.mxu0 %v994
        %1004 = vmatmul.bf16.gmra.mxu0 %v991
        %v1005 = vpop.f32.mrf.mxu0
        %v1006 = vadd.f32 0.0, %v1005
        %v1007 = vpop.f32.mrf.mxu0
        %1008 = vdwg.mxu0
        %1009 = vrot.lane.b32.xlu0 %v873, 64
        %v1010 = vpop.permute.xlu0 %1009
        %v1012 = vsel %vm829, %v964, 0
        %v1015 = vsel %vm971, %v1010, 0
        %1017 = vmatpush.bf16.msra.mxu0 0
        %1018 = vmatpush.bf16.msra.mxu0 0
        %1019 = vmatpush.bf16.msra.mxu0 0
        %1020 = vmatpush.bf16.msra.mxu0 0
        %1021 = vmatpush.bf16.msra.mxu0 0
        %1022 = vmatpush.bf16.msra.mxu0 0
        %1023 = vmatpush.bf16.msra.mxu0 0
        %1024 = vmatpush.bf16.msra.mxu0 %v1015
        %1025 = vmatmul.bf16.gmra.mxu0 %v1012
        %v1026 = vpop.f32.mrf.mxu0
        %v1027 = vadd.f32 0.0, %v1026
        %v1028 = vpop.f32.mrf.mxu0
        %1029 = vdwg.mxu0
        %1030 = vrot.lane.b32.xlu0 %v896, 64
        %v1031 = vpop.permute.xlu0 %1030
        %v1033 = vsel %vm829, %v965, 0
        %v1036 = vsel %vm971, %v1031, 0
        %1038 = vmatpush.bf16.msra.mxu0 0
        %1039 = vmatpush.bf16.msra.mxu0 0
        %1040 = vmatpush.bf16.msra.mxu0 0
        %1041 = vmatpush.bf16.msra.mxu0 0
        %1042 = vmatpush.bf16.msra.mxu0 0
        %1043 = vmatpush.bf16.msra.mxu0 0
        %1044 = vmatpush.bf16.msra.mxu0 0
        %1045 = vmatpush.bf16.msra.mxu0 %v1036
        %1046 = vmatmul.bf16.gmra.mxu0 %v1033
        %v1047 = vpop.f32.mrf.mxu0
        %v1048 = vadd.f32 0.0, %v1047
        %v1049 = vpop.f32.mrf.mxu0
        %1050 = vdwg.mxu0
        %1052 = vrot.lane.b32.xlu0 %v1006, 8
        %v1053 = vpop.permute.xlu0 %1052
        %1056 = vrot.lane.b32.xlu0 %v1027, 16
        %v1057 = vpop.permute.xlu0 %1056
        %1060 = vrot.lane.b32.xlu0 %v1048, 24
        %v1061 = vpop.permute.xlu0 %1060
        %v1063 = vsel %vm829, %v985, %v1053
        %vm1064 = vcmask 130048
        %v1065 = vsel %vm1064, %v1063, %v1057
        %vm1066 = vcmask 195584
        %v1067 = vsel %vm1066, %v1065, %v1061
        %v1068 = vpack.c.bf16 %v1067, %v1067
        %v1069 = vld [vmem:[%s726] sm:$0xf]
        %v1070 = vld [vmem:[%s726 + $0x4] sm:$0xf]
        %v1071 = vld [vmem:[%s726 + $0x8] sm:$0xf]
        %v1072 = vld [vmem:[%s726 + $0xc] sm:$0xf]
        %v1073 = vld [vmem:[%s729] sm:$0x1]
        %v1075 = vperm.slane %v1073, 0
        %v1081 = vunpack.c.l.b16 %v1069
        %v1082 = vunpack.c.l.b16 %v1070
        %v1083 = vunpack.c.l.b16 %v1071
        %v1084 = vunpack.c.l.b16 %v1072
        %v1085 = vpack.c.b16 %v1082, %v1081
        %v1086 = vpack.c.b16 %v1084, %v1083
        %v1090 = vsel %vm785, %v1068, 0
        %1092 = vmatpush.bf16.msra.mxu0 0
        %1093 = vmatpush.bf16.msra.mxu0 0
        %1094 = vmatpush.bf16.msra.mxu0 0
        %1095 = vmatpush.bf16.msra.mxu0 0
        %1096 = vmatpush.bf16.msra.mxu0 0
        %1097 = vmatpush.bf16.msra.mxu0 0
        %1098 = vmatpush.bf16.msra.mxu0 %v1086
        %1099 = vmatpush.bf16.msra.mxu0 %v1085
        %1100 = vmatmul.bf16.gmra.mxu0 %v1090
        %v1101 = vpop.f32.mrf.mxu0
        %v1102 = vadd.f32 %v1075, %v1101
        %v1103 = vpop.f32.mrf.mxu0
        %1104 = vdwg.mxu0
        %v1105 = vadd.f32 %v763, %v1102
        %v1106 = vld [vmem:[%s732] sm:$0x1]
        %v1107 = vld [vmem:[%s735] sm:$0x1]
        %v1108 = vsel %vm785, %v1105, 0.0
        %1109 = vadd.xlane.f32.xlu0 %v1108
        %v1110 = vpop.xlane.xlu0 %1109
        %v1111 = vrcp.pop 32.0
        %v1112 = vmul.f32 32.0, %v1111
        %v1113 = vsub.f32 1.0, %v1112
        %v1114 = vmul.f32 %v1111, %v1113
        %v1115 = vadd.f32 %v1111, %v1114
        %vm1116 = vweird.f32 %v1111
        %v1117 = vsel %vm1116, %v1111, %v1115
        %v1118 = vmul.f32 %v1110, %v1117
        %v1119 = vsub.f32 %v1105, %v1118
        %v1120 = vmul.f32 %v1119, %v1119
        %v1121 = vsel %vm785, %v1120, 0.0
        %1122 = vadd.xlane.f32.xlu0 %v1121
        %v1123 = vpop.xlane.xlu0 %1122
        %v1124 = vmul.f32 %v1123, %v1117
        %v1125 = vadd.f32 %v1124, 1e-05
        %v1126 = vrsqrt.pop %v1125
        %v1127 = vmul.f32 %v1126, %v1125
        %v1128 = vmul.f32 %v1127, %v1126
        %v1129 = vmul.f32 0.5, %v1128
        %v1130 = vsub.f32 1.5, %v1129
        %v1131 = vmul.f32 %v1126, %v1130
        %vm1132 = vweird.f32 %v1125
        %vm1133 = vweird.f32 %v1126
        %vm1134 = vmor %vm1132, %vm1133
        %v1135 = vsel %vm1134, %v1126, %v1131
        %v1136 = vmul.f32 %v1119, %v1135
        %v1138 = vperm.slane %v1106, 0
        %v1140 = vmul.f32 %v1136, %v1138
        %v1142 = vperm.slane %v1107, 0
        %v1144 = vadd.f32 %v1140, %v1142
        %v1145 = vpack.c.bf16 %v1144, %v1144
        %v1146 = vld [vmem:[%s740] sm:$0xf]
        %v1147 = vld [vmem:[%s740 + $0x4] sm:$0xf]
        %v1148 = vld [vmem:[%s740 + $0x8] sm:$0xf]
        %v1149 = vld [vmem:[%s740 + $0xc] sm:$0xf]
        %v1150 = vld [vmem:[%s743] sm:$0x1]
        %v1152 = vperm.slane %v1150, 0
        %v1158 = vunpack.c.l.b16 %v1146
        %v1159 = vunpack.c.l.b16 %v1147
        %v1160 = vunpack.c.l.b16 %v1148
        %v1161 = vunpack.c.l.b16 %v1149
        %v1162 = vpack.c.b16 %v1159, %v1158
        %v1163 = vpack.c.b16 %v1161, %v1160
        %v1167 = vsel %vm785, %v1145, 0
        %1169 = vmatpush.bf16.msra.mxu0 0
        %1170 = vmatpush.bf16.msra.mxu0 0
        %1171 = vmatpush.bf16.msra.mxu0 0
        %1172 = vmatpush.bf16.msra.mxu0 0
        %1173 = vmatpush.bf16.msra.mxu0 0
        %1174 = vmatpush.bf16.msra.mxu0 0
        %1175 = vmatpush.bf16.msra.mxu0 %v1163
        %1176 = vmatpush.bf16.msra.mxu0 %v1162
        %1177 = vmatmul.bf16.gmra.mxu0 %v1167
        %v1178 = vpop.f32.mrf.mxu0
        %v1179 = vadd.f32 %v1152, %v1178
        %v1180 = vpop.f32.mrf.mxu0
        %1181 = vdwg.mxu0
        %v1182 = vmax.f32 %v1179, 0.0
        %v1183 = vpack.c.bf16 %v1182, %v1182
        %v1184 = vld [vmem:[%s748] sm:$0xf]
        %v1185 = vld [vmem:[%s748 + $0x4] sm:$0xf]
        %v1186 = vld [vmem:[%s748 + $0x8] sm:$0xf]
        %v1187 = vld [vmem:[%s748 + $0xc] sm:$0xf]
        %v1188 = vld [vmem:[%s748 + $0x10] sm:$0xf]
        %v1189 = vld [vmem:[%s748 + $0x14] sm:$0xf]
        %v1190 = vld [vmem:[%s748 + $0x18] sm:$0xf]
        %v1191 = vld [vmem:[%s748 + $0x1c] sm:$0xf]
        %v1192 = vld [vmem:[%s613] sm:$0x1]
        %v1194 = vperm.slane %v1192, 0
        %v1204 = vunpack.c.l.b16 %v1184
        %v1205 = vunpack.c.l.b16 %v1185
        %v1206 = vunpack.c.l.b16 %v1186
        %v1207 = vunpack.c.l.b16 %v1187
        %v1208 = vunpack.c.l.b16 %v1188
        %v1209 = vunpack.c.l.b16 %v1189
        %v1210 = vunpack.c.l.b16 %v1190
        %v1211 = vunpack.c.l.b16 %v1191
        %v1212 = vpack.c.b16 %v1205, %v1204
        %v1213 = vpack.c.b16 %v1207, %v1206
        %v1214 = vpack.c.b16 %v1209, %v1208
        %v1215 = vpack.c.b16 %v1211, %v1210
        %vm1220 = vcmask 523264
        %v1222 = vsel %vm1220, %v1183, 0
        %1224 = vmatpush.bf16.msra.mxu0 0
        %1225 = vmatpush.bf16.msra.mxu0 0
        %1226 = vmatpush.bf16.msra.mxu0 0
        %1227 = vmatpush.bf16.msra.mxu0 0
        %1228 = vmatpush.bf16.msra.mxu0 %v1215
        %1229 = vmatpush.bf16.msra.mxu0 %v1214
        %1230 = vmatpush.bf16.msra.mxu0 %v1213
        %1231 = vmatpush.bf16.msra.mxu0 %v1212
        %1232 = vmatmul.bf16.gmra.mxu0 %v1222
        %v1233 = vpop.f32.mrf.mxu0
        %v1234 = vadd.f32 %v1194, %v1233
        %v1235 = vpop.f32.mrf.mxu0
        %1236 = vdwg.mxu0
        %v1237 = vadd.f32 %v1144, %v1234
        %v1238 = vld [vmem:[%s622] sm:$0x1]
        %v1239 = vld [vmem:[%s751] sm:$0x1]
        %v1240 = vsel %vm785, %v1237, 0.0
        %1241 = vadd.xlane.f32.xlu0 %v1240
        %v1242 = vpop.xlane.xlu0 %1241
        %v1243 = vmul.f32 %v1242, %v1117
        %v1244 = vsub.f32 %v1237, %v1243
        %v1245 = vmul.f32 %v1244, %v1244
        %v1246 = vsel %vm785, %v1245, 0.0
        %1247 = vadd.xlane.f32.xlu0 %v1246
        %v1248 = vpop.xlane.xlu0 %1247
        %v1249 = vmul.f32 %v1248, %v1117
        %v1250 = vadd.f32 %v1249, 1e-05
        %v1251 = vrsqrt.pop %v1250
        %v1252 = vmul.f32 %v1251, %v1250
        %v1253 = vmul.f32 %v1252, %v1251
        %v1254 = vmul.f32 0.5, %v1253
        %v1255 = vsub.f32 1.5, %v1254
        %v1256 = vmul.f32 %v1251, %v1255
        %vm1257 = vweird.f32 %v1250
        %vm1258 = vweird.f32 %v1251
        %vm1259 = vmor %vm1257, %vm1258
        %v1260 = vsel %vm1259, %v1251, %v1256
        %v1261 = vmul.f32 %v1244, %v1260
        %v1263 = vperm.slane %v1238, 0
        %v1265 = vmul.f32 %v1261, %v1263
        %v1267 = vperm.slane %v1239, 0
        %v1269 = vadd.f32 %v1265, %v1267
        %1270 = vst.msk [vmem:[#allocation2] sm:$0xff] %vm785, %v1269
        %p1271 = scmp.eq.s32.totalorder %s39, 1
        // Predicated region
        $region97: #{tpu_custom_call.1} parent=79 // pred_check
          %p1272 = pneg %p1271
        $region98: #{tpu_custom_call.1} parent=79 // pred_check_branch
          %1274 = sbr.rel (%p1272) target = $region100
        $region99: #{tpu_custom_call.1} parent=79 // pred_region
          %v1275 = vld [vmem:[%s13] sm:$0xff]
          %v1276 = vld [vmem:[%s13 + $0x8] sm:$0xff]
          %v1277 = vld [vmem:[%s13 + $0x10] sm:$0xff]
          %v1278 = vld [vmem:[%s13 + $0x18] sm:$0xff]
          %v1279 = vld [vmem:[#allocation3] sm:$0x1]
          %v1281 = vrot.slane %v1269, 7
          %v1282 = vsel %vm785, %v1281, 0
          %1284 = vmatpush.msra.mxu0 0.0
          %1285 = vmatpush.msra.mxu0 0.0
          %1286 = vmatpush.msra.mxu0 0.0
          %1287 = vmatpush.msra.mxu0 0.0
          %1288 = vmatpush.msra.mxu0 0.0
          %1289 = vmatpush.msra.mxu0 0.0
          %1290 = vmatpush.msra.mxu0 0.0
          %1291 = vmatpush.msra.mxu0 0.0
          %1292 = vmatpush.msra.mxu0 0.0
          %1293 = vmatpush.msra.mxu0 0.0
          %1294 = vmatpush.msra.mxu0 0.0
          %1295 = vmatpush.msra.mxu0 0.0
          %1296 = vmatpush.msra.mxu0 %v1278
          %1297 = vmatpush.msra.mxu0 %v1277
          %1298 = vmatpush.msra.mxu0 %v1276
          %1299 = vmatpush.msra.mxu0 %v1275
          %1300 = vmatmul.f32.gmra.mxu0 %v1282
          %v1301 = vpop.f32.mrf.mxu0
          %v1302 = vadd.f32 %v1279, %v1301
          %1303 = vdwg.mxu0
          %vm1304 = vcmask 0
          %1305 = vst.msk [vmem:[%s754] sm:$0x1] %vm1304, %v1302
        $region100: #{tpu_custom_call.1} parent=79 // pred_fallthru
          _
        %p1306 = scmp.lt.s32.totalorder %s38, 1
        %s1307 = scalar_select %p1306, %s38, 1
        %s1308 = scalar_lea.vmem %s15, %s1307
        // Predicated region
        $region101: #{tpu_custom_call.1} parent=79 // pred_check
          %p1309 = pneg %p444
        $region102: #{tpu_custom_call.1} parent=79 // pred_check_branch
          %1311 = sbr.rel (%p1309) target = $region104
        $region103: #{tpu_custom_call.1} parent=79 // pred_region
          _
        $region104: #{tpu_custom_call.1} parent=79 // pred_fallthru
          _
      $region80: #{tpu_custom_call.1} parent=5 // pred_fallthru
        _
      %p1312 = scmp.le.s32.totalorder 2, %s29
      // Predicated region
      $region105: #{tpu_custom_call.1} parent=5 // pred_check
        %p1313 = pneg %p1312
      $region106: #{tpu_custom_call.1} parent=5 // pred_check_branch
        %1315 = sbr.rel (%p1313) target = $region108
      $region107: #{tpu_custom_call.1} parent=5 // pred_region
        %s1316 = ssub.s32 %s29, 2
        // Predicated region
        $region109: #{tpu_custom_call.1} parent=107 // pred_check
          %p1317 = pneg %p450
        $region110: #{tpu_custom_call.1} parent=107 // pred_check_branch
          %1319 = sbr.rel (%p1317) target = $region112
        $region111: #{tpu_custom_call.1} parent=107 // pred_region
          %p1320 = scmp.lt.s32.totalorder %s40, 1
          %s1321 = scalar_select %p1320, %s40, 1
          %s1322 = scalar_lea.vmem %s15, %s1321
        $region112: #{tpu_custom_call.1} parent=107 // pred_fallthru
          _
      $region108: #{tpu_custom_call.1} parent=5 // pred_fallthru
        _
    $region6: #{tpu_custom_call.1} parent=1 // loop_footer
      %s33 = sadd.s32 1, %s29
    $region7: #{tpu_custom_call.1} parent=1 // loop_footer_branch
      %28 = sbr.rel target = $region3
    $region8: #{tpu_custom_call.1} parent=1 // loop_exit
      _
    %1323 = vsyncpa [#allocation5], 1
    %s1324 = scalar_lea.sflag [#allocation5], 1
    %1325 = vsyncpa %s1324, 1
    %1326 = vsyncpa [#allocation7], 1
    %s1327 = scalar_lea.sflag [#allocation7], 1
    %1328 = vsyncpa %s1327, 1

</llo_original>
